<compile_context>
chip_gen: v5e
topology: v5e:2x2
jax: 0.10.0
libtpu: 0.0.40
codegen_flags: <defaults>
</compile_context>

<pallas_src>
import jax
import jax.numpy as jnp
from jax.experimental import pallas as pl
from jax.experimental.pallas import tpu as pltpu

INPUT_DIM = 28 * 28      # 784 (= 98 * 8, legal as a full-extent block dim)
HIDDEN_DIM = 512
LATENT_DIM = 300
OUT_PAD = 640            # 5 * 128: [mean(300) | logvar(300) | zero pad(40)]


def _round_up(n, m):
    return ((n + m - 1) // m) * m


def encoder_kernel(x_ref, w1_ref, b1_ref, w2_ref, b2_ref, out_ref):
    # x: (TB, 784) bf16, w1: (784, 512) bf16, b1: (1, 512) f32
    h = jnp.dot(x_ref[...], w1_ref[...], preferred_element_type=jnp.float32)
    h = jnp.maximum(h + b1_ref[...], 0.0)

    # Fused fc2_mean / fc2_logvar: w2: (512, 640) bf16, b2: (1, 640) f32
    out = jnp.dot(h.astype(jnp.bfloat16), w2_ref[...],
                  preferred_element_type=jnp.float32)
    out_ref[...] = out + b2_ref[...]


def prepare_params(params):
    """Fuse / cast the logical PyTorch-style params for the kernel.

    Logical: w1 (784, 512), b1 (1, 512), wm/wv (512, 300), bm/bv (1, 300)
    Kernel : w1 (784, 512) bf16, b1 (1, 512) f32,
             w2 (512, 640) bf16 = [wm | wv | 0], b2 (1, 640) f32 = [bm | bv | 0]
    """
    w1, b1, wm, bm, wv, bv = params

    w1p = w1.astype(jnp.bfloat16)
    b1p = b1.astype(jnp.float32)

    w2p = jnp.zeros((HIDDEN_DIM, OUT_PAD), jnp.bfloat16)
    w2p = w2p.at[:, :LATENT_DIM].set(wm.astype(jnp.bfloat16))
    w2p = w2p.at[:, LATENT_DIM:2 * LATENT_DIM].set(wv.astype(jnp.bfloat16))

    b2p = jnp.zeros((1, OUT_PAD), jnp.float32)
    b2p = b2p.at[:, :LATENT_DIM].set(bm.reshape(1, LATENT_DIM))
    b2p = b2p.at[:, LATENT_DIM:2 * LATENT_DIM].set(bv.reshape(1, LATENT_DIM))

    return w1p, b1p, w2p, b2p


def encoder_forward(x, params):
    """x: (B, ...) — flattened from dim 1 like torch.flatten(x, start_dim=1)."""
    b = x.shape[0]
    x2d = x.reshape(b, -1)                      # glue: flatten(start_dim=1)
    assert x2d.shape[1] == INPUT_DIM

    w1p, b1p, w2p, b2p = prepare_params(params)

    # Batch tile: multiple of 16 (bf16 sublane tile), capped at 256 to fill
    # the 256-row MXU on v6e/v7x and amortize per-grid-step overhead.
    tb = min(256, _round_up(b, 16))
    b_pad = _round_up(b, tb)
    # Keep >= 2 grid steps when the batch is big enough so the "parallel"
    # axis can shard across v7x's two TensorCores.
    if b_pad // tb < 2 and tb > 16:
        tb = _round_up(tb // 2, 16)
        b_pad = _round_up(b, tb)

    xb = x2d.astype(jnp.bfloat16)
    if b_pad != b:
        xb = jnp.pad(xb, ((0, b_pad - b), (0, 0)))

    out = pl.pallas_call(
        encoder_kernel,
        out_shape=jax.ShapeDtypeStruct((b_pad, OUT_PAD), jnp.float32),
        grid=(b_pad // tb,),
        in_specs=[
            pl.BlockSpec((tb, INPUT_DIM), lambda i: (i, 0)),           # x tile
            pl.BlockSpec((INPUT_DIM, HIDDEN_DIM), lambda i: (0, 0)),   # w1 (resident)
            pl.BlockSpec((1, HIDDEN_DIM), lambda i: (0, 0)),           # b1 (resident)
            pl.BlockSpec((HIDDEN_DIM, OUT_PAD), lambda i: (0, 0)),     # w2 (resident)
            pl.BlockSpec((1, OUT_PAD), lambda i: (0, 0)),              # b2 (resident)
        ],
        out_specs=pl.BlockSpec((tb, OUT_PAD), lambda i: (i, 0)),
        compiler_params=pltpu.CompilerParams(
            dimension_semantics=("parallel",)),
    )(xb, w1p, b1p, w2p, b2p)

    mean = out[:b, :LATENT_DIM]
    logvar = out[:b, LATENT_DIM:2 * LATENT_DIM]
    return mean, logvar


def init_params(key):
    """Deterministic init mimicking PyTorch nn.Linear default:
    U(-1/sqrt(fan_in), 1/sqrt(fan_in)). Weights stored as (in, out)."""
    ks = jax.random.split(key, 6)

    def linear(kw, kb, fan_in, fan_out):
        bound = 1.0 / jnp.sqrt(fan_in)
        w = jax.random.uniform(kw, (fan_in, fan_out), jnp.float32, -bound, bound)
        b = jax.random.uniform(kb, (1, fan_out), jnp.float32, -bound, bound)
        return w, b

    w1, b1 = linear(ks[0], ks[1], INPUT_DIM, HIDDEN_DIM)
    wm, bm = linear(ks[2], ks[3], HIDDEN_DIM, LATENT_DIM)
    wv, bv = linear(ks[4], ks[5], HIDDEN_DIM, LATENT_DIM)
    return (w1, b1, wm, bm, wv, bv)


def encoder_ref_f32(x, params):
    """Pure-JAX f32 reference (PyTorch semantics)."""
    b = x.shape[0]
    x2d = x.reshape(b, -1)
    w1, b1, wm, bm, wv, bv = params
    h = jnp.maximum(x2d @ w1 + b1, 0.0)
    return h @ wm + bm, h @ wv + bv


def encoder_ref_bf16(x, params):
    """Pure-JAX reference emulating bf16 weights/activations with f32 accum."""
    b = x.shape[0]
    x2d = x.reshape(b, -1).astype(jnp.bfloat16)
    w1, b1, wm, bm, wv, bv = params
    h = jnp.dot(x2d, w1.astype(jnp.bfloat16),
                preferred_element_type=jnp.float32) + b1
    h = jnp.maximum(h, 0.0).astype(jnp.bfloat16)
    mean = jnp.dot(h, wm.astype(jnp.bfloat16),
                   preferred_element_type=jnp.float32) + bm
    logvar = jnp.dot(h, wv.astype(jnp.bfloat16),
                     preferred_element_type=jnp.float32) + bv
    return mean, logvar


if __name__ == "__main__":
    key = jax.random.PRNGKey(0)
    kp, kx = jax.random.split(key)

    params = init_params(kp)
    # Small, module-consistent input: batch=2 MNIST-like images (2, 28, 28).
    x = jax.random.normal(kx, (2, 28, 28), dtype=jnp.float32)

    mean, logvar = jax.block_until_ready(encoder_forward(x, params))
    assert mean.shape == (2, LATENT_DIM) and logvar.shape == (2, LATENT_DIM)

    # Tight check vs. bf16-emulating reference (same precision recipe).
    mean_b, logvar_b = encoder_ref_bf16(x, params)
    assert jnp.allclose(mean, mean_b, atol=2e-3, rtol=2e-3)
    assert jnp.allclose(logvar, logvar_b, atol=2e-3, rtol=2e-3)

    # Loose semantic check vs. full-f32 PyTorch-equivalent reference.
    mean_f, logvar_f = encoder_ref_f32(x, params)
    assert jnp.allclose(mean, mean_f, atol=5e-2, rtol=5e-2)
    assert jnp.allclose(logvar, logvar_f, atol=5e-2, rtol=5e-2)

    print("KERNEL_OK")
</pallas_src>

<mosaic_0001>
module attributes {stable_mosaic.version = 11 : i64} {
  func.func @encoder_kernel(%arg0: i32, %arg1: memref<16x784xbf16, #tpu.memory_space<vmem>>, %arg2: memref<784x512xbf16, #tpu.memory_space<vmem>>, %arg3: memref<1x512xf32, #tpu.memory_space<vmem>>, %arg4: memref<512x640xbf16, #tpu.memory_space<vmem>>, %arg5: memref<1x640xf32, #tpu.memory_space<vmem>>, %arg6: memref<16x640xf32, #tpu.memory_space<vmem>>) attributes {dimension_semantics = [#tpu.dimension_semantics<parallel>], iteration_bounds = array<i64: 1>, scalar_prefetch = 0 : i64, scratch_operands = 0 : i64, tpu.core_type = #tpu.core_type<tc>, window_params = [{transform_indices = @transform_0, window_bounds = array<i64: 16, 784>}, {pipeline_mode = #tpu.pipeline_mode<synchronous>, transform_indices = @transform_1, window_bounds = array<i64: 784, 512>}, {pipeline_mode = #tpu.pipeline_mode<synchronous>, transform_indices = @transform_2, window_bounds = array<i64: 1, 512>}, {pipeline_mode = #tpu.pipeline_mode<synchronous>, transform_indices = @transform_3, window_bounds = array<i64: 512, 640>}, {pipeline_mode = #tpu.pipeline_mode<synchronous>, transform_indices = @transform_4, window_bounds = array<i64: 1, 640>}, {transform_indices = @transform_5, window_bounds = array<i64: 16, 640>}]} {
    %c0 = arith.constant 0 : index
    %c0_0 = arith.constant 0 : index
    %0 = vector.load %arg1[%c0, %c0_0] : memref<16x784xbf16, #tpu.memory_space<vmem>>, vector<16x784xbf16>
    %c0_1 = arith.constant 0 : index
    %c0_2 = arith.constant 0 : index
    %1 = vector.load %arg2[%c0_1, %c0_2] : memref<784x512xbf16, #tpu.memory_space<vmem>>, vector<784x512xbf16>
    %cst = arith.constant dense<0.000000e+00> : vector<16x512xf32>
    %2 = tpu.matmul %0, %1, %cst {dimension_numbers = #tpu.dot_dimension_numbers<[1], [0], [0], [1], [0, 0, 1, 1], [], []>} : vector<16x784xbf16>, vector<784x512xbf16>, vector<16x512xf32> -> vector<16x512xf32>
    %c0_3 = arith.constant 0 : index
    %c0_4 = arith.constant 0 : index
    %3 = vector.load %arg3[%c0_3, %c0_4] : memref<1x512xf32, #tpu.memory_space<vmem>>, vector<1x512xf32>
    %4 = vector.broadcast %3 : vector<1x512xf32> to vector<16x512xf32>
    %5 = arith.addf %2, %4 : vector<16x512xf32>
    %cst_5 = arith.constant 0.000000e+00 : f32
    %6 = vector.broadcast %cst_5 : f32 to vector<16x512xf32>
    %7 = arith.maximumf %5, %6 : vector<16x512xf32>
    %8 = arith.truncf %7 : vector<16x512xf32> to vector<16x512xbf16>
    %c0_6 = arith.constant 0 : index
    %c0_7 = arith.constant 0 : index
    %9 = vector.load %arg4[%c0_6, %c0_7] : memref<512x640xbf16, #tpu.memory_space<vmem>>, vector<512x640xbf16>
    %cst_8 = arith.constant dense<0.000000e+00> : vector<16x640xf32>
    %10 = tpu.matmul %8, %9, %cst_8 {dimension_numbers = #tpu.dot_dimension_numbers<[1], [0], [0], [1], [0, 0, 1, 1], [], []>} : vector<16x512xbf16>, vector<512x640xbf16>, vector<16x640xf32> -> vector<16x640xf32>
    %c0_9 = arith.constant 0 : index
    %c0_10 = arith.constant 0 : index
    %11 = vector.load %arg5[%c0_9, %c0_10] : memref<1x640xf32, #tpu.memory_space<vmem>>, vector<1x640xf32>
    %12 = vector.broadcast %11 : vector<1x640xf32> to vector<16x640xf32>
    %13 = arith.addf %10, %12 : vector<16x640xf32>
    %c0_11 = arith.constant 0 : index
    %c0_12 = arith.constant 0 : index
    %14 = vector.load %arg6[%c0_11, %c0_12] : memref<16x640xf32, #tpu.memory_space<vmem>>, vector<16x640xf32>
    tpu.vector_store %arg6[%c0_11, %c0_12], %13 {strides = array<i32>} : memref<16x640xf32, #tpu.memory_space<vmem>>, vector<16x640xf32>,
    return
  }
  func.func @transform_0(%arg0: i32) -> (i32, i32) {
    %c0_i32 = arith.constant 0 : i32
    %c0_i32_0 = arith.constant 0 : i32
    return %arg0, %c0_i32 : i32, i32
  }
  func.func @transform_1(%arg0: i32) -> (i32, i32) {
    %c0_i32 = arith.constant 0 : i32
    %c0_i32_0 = arith.constant 0 : i32
    %c0_i32_1 = arith.constant 0 : i32
    return %c0_i32, %c0_i32_0 : i32, i32
  }
  func.func @transform_2(%arg0: i32) -> (i32, i32) {
    %c0_i32 = arith.constant 0 : i32
    %c0_i32_0 = arith.constant 0 : i32
    %c0_i32_1 = arith.constant 0 : i32
    return %c0_i32, %c0_i32_0 : i32, i32
  }
  func.func @transform_3(%arg0: i32) -> (i32, i32) {
    %c0_i32 = arith.constant 0 : i32
    %c0_i32_0 = arith.constant 0 : i32
    %c0_i32_1 = arith.constant 0 : i32
    return %c0_i32, %c0_i32_0 : i32, i32
  }
  func.func @transform_4(%arg0: i32) -> (i32, i32) {
    %c0_i32 = arith.constant 0 : i32
    %c0_i32_0 = arith.constant 0 : i32
    %c0_i32_1 = arith.constant 0 : i32
    return %c0_i32, %c0_i32_0 : i32, i32
  }
  func.func @transform_5(%arg0: i32) -> (i32, i32) {
    %c0_i32 = arith.constant 0 : i32
    %c0_i32_0 = arith.constant 0 : i32
    return %arg0, %c0_i32 : i32, i32
  }
}

</mosaic_0001>

<llo_original>
// kernel: tpu_custom_call.1
$region0: #{tpu_custom_call.1}
  #allocation0 [shape = 'u32[]', space=smem, size = 0x4, offset = 0x4, fixed_abs, tag = 'smem constant byte address 0x4 - core index']
  #allocation1 [shape = 'u32[72,128]{1,0:T(1,128)}', space=vmem, size = 0x9000, scoped, tag = 'internal scratch']
  %s0 = inlined_call_operand.hbm [shape: bf16[16,784], index: 0, kind: input, shape index: {}]
  %s1 = inlined_call_operand.hbm [shape: bf16[784,512], index: 1, kind: input, shape index: {}]
  %s2 = inlined_call_operand.hbm [shape: f32[1,512], index: 2, kind: input, shape index: {}]
  %s3 = inlined_call_operand.hbm [shape: bf16[512,640], index: 3, kind: input, shape index: {}]
  %s4 = inlined_call_operand.hbm [shape: f32[1,640], index: 4, kind: input, shape index: {}]
  %s5 = inlined_call_operand.hbm [shape: f32[16,640], index: 5, kind: output, shape index: {}]
  %s6 = sld [smem:[#allocation0]]
  $region50: #{tpu_custom_call.1} parent=0
    _
  %s8 = ssub.s32 1, %s6
  %s9 = scalar_select 0, %s8, %s6
  $region1: #{tpu_custom_call.1} parent=0
    #allocation2 [shape = 'u8[28672]{0}', space=vmem, size = 0x7000, scoped, tag = 'input window, operand 0, single buffered']
    #allocation3 [shape = 's32[1]{0}', space=sflag, size = 0x4, scoped, tag = 'scoped memory for tpu_custom_call.1']
    #allocation4 [shape = 's32[1]{0}', space=sflag, size = 0x4, scoped, tag = 'scoped memory for tpu_custom_call.1']
    #allocation5 [shape = 'u8[802816]{0}', space=vmem, size = 0xc4000, scoped, tag = 'input window, operand 1, single buffered']
    #allocation6 [shape = 's32[1]{0}', space=sflag, size = 0x4, scoped, tag = 'scoped memory for tpu_custom_call.1']
    #allocation7 [shape = 'u8[2048]{0}', space=vmem, size = 0x800, scoped, tag = 'input window, operand 2, single buffered']
    #allocation8 [shape = 'u8[655360]{0}', space=vmem, size = 0xa0000, scoped, tag = 'input window, operand 3, single buffered']
    #allocation9 [shape = 's32[1]{0}', space=sflag, size = 0x4, scoped, tag = 'scoped memory for tpu_custom_call.1']
    #allocation10 [shape = 'u8[2560]{0}', space=vmem, size = 0xc00, scoped, tag = 'input window, operand 4, single buffered']
    #allocation11 [shape = 'u8[40960]{0}', space=vmem, size = 0xa000, scoped, tag = 'output window, operand 0, single buffered']
    %10 = vsyncpa [#allocation3], 0
    %11 = vsyncpa [#allocation6], 0
    %12 = vsyncpa [#allocation9], 0
    %13 = vsyncpa [#allocation4], 0
    // Predicated region
    $region2: #{tpu_custom_call.1} parent=1 // pred_check
      _
    $region3: #{tpu_custom_call.1} parent=1 // pred_check_branch
      %15 = sbr.rel (0) target = $region5
    $region4: #{tpu_custom_call.1} parent=1 // pred_region
      %17 = vsyncadd [#allocation3], 0
      %s18 = sshll.u32 %s0, 4
      %s19 = int_to_ptr.hbm [resolvable:$true] %s18
      %s20 = sshll.u32 [#allocation2], 4
      %s21 = int_to_ptr.vmem [resolvable:$true] %s20
      %26 = dma.hbm_to_vmem [thread:$0]  %s19, 896, %s21, [#allocation3], 448, 448, 28
    $region5: #{tpu_custom_call.1} parent=1 // pred_fallthru
      _
    // Predicated region
    $region6: #{tpu_custom_call.1} parent=1 // pred_check
      _
    $region7: #{tpu_custom_call.1} parent=1 // pred_check_branch
      %28 = sbr.rel (0) target = $region9
    $region8: #{tpu_custom_call.1} parent=1 // pred_region
      %30 = vsyncadd [#allocation6], 0
      %s31 = sshll.u32 %s1, 4
      %s32 = int_to_ptr.hbm [resolvable:$true] %s31
      %s33 = sshll.u32 [#allocation5], 4
      %s34 = int_to_ptr.vmem [resolvable:$true] %s33
      %39 = dma.hbm_to_vmem [thread:$0]  %s32, 25088, %s34, [#allocation6], 256, 256, 16
    $region9: #{tpu_custom_call.1} parent=1 // pred_fallthru
      _
    // Predicated region
    $region10: #{tpu_custom_call.1} parent=1 // pred_check
      _
    $region11: #{tpu_custom_call.1} parent=1 // pred_check_branch
      %41 = sbr.rel (0) target = $region13
    $region12: #{tpu_custom_call.1} parent=1 // pred_region
      %43 = vsyncadd [#allocation6], 0
      %s45 = sshll.u32 %s2, 4
      %s46 = int_to_ptr.hbm [resolvable:$true] %s45
      %s47 = sshll.u32 [#allocation7], 4
      %s48 = int_to_ptr.vmem [resolvable:$true] %s47
      %50 = dma.hbm_to_vmem [thread:$0]  %s46, 64, %s48, [#allocation6]
    $region13: #{tpu_custom_call.1} parent=1 // pred_fallthru
      _
    // Predicated region
    $region14: #{tpu_custom_call.1} parent=1 // pred_check
      _
    $region15: #{tpu_custom_call.1} parent=1 // pred_check_branch
      %52 = sbr.rel (0) target = $region17
    $region16: #{tpu_custom_call.1} parent=1 // pred_region
      %54 = vsyncadd [#allocation9], 0
      %s55 = sshll.u32 %s3, 4
      %s56 = int_to_ptr.hbm [resolvable:$true] %s55
      %s57 = sshll.u32 [#allocation8], 4
      %s58 = int_to_ptr.vmem [resolvable:$true] %s57
      %63 = dma.hbm_to_vmem [thread:$0]  %s56, 20480, %s58, [#allocation9], 320, 320, 20
    $region17: #{tpu_custom_call.1} parent=1 // pred_fallthru
      _
    // Predicated region
    $region18: #{tpu_custom_call.1} parent=1 // pred_check
      _
    $region19: #{tpu_custom_call.1} parent=1 // pred_check_branch
      %65 = sbr.rel (0) target = $region21
    $region20: #{tpu_custom_call.1} parent=1 // pred_region
      %67 = vsyncadd [#allocation9], 0
      %s69 = sshll.u32 %s4, 4
      %s70 = int_to_ptr.hbm [resolvable:$true] %s69
      %s71 = sshll.u32 [#allocation10], 4
      %s72 = int_to_ptr.vmem [resolvable:$true] %s71
      %74 = dma.hbm_to_vmem [thread:$0]  %s70, 80, %s72, [#allocation9]
    $region21: #{tpu_custom_call.1} parent=1 // pred_fallthru
      _
    // Predicated region
    $region22: #{tpu_custom_call.1} parent=1 // pred_check
      _
    $region23: #{tpu_custom_call.1} parent=1 // pred_check_branch
      %76 = sbr.rel (0) target = $region25
    $region24: #{tpu_custom_call.1} parent=1 // pred_region
      %78 = dma.done [#allocation3], 896
    $region25: #{tpu_custom_call.1} parent=1 // pred_fallthru
      _
    // Predicated region
    $region26: #{tpu_custom_call.1} parent=1 // pred_check
      _
    $region27: #{tpu_custom_call.1} parent=1 // pred_check_branch
      %80 = sbr.rel (0) target = $region29
    $region28: #{tpu_custom_call.1} parent=1 // pred_region
      %82 = dma.done [#allocation6], 25088
    $region29: #{tpu_custom_call.1} parent=1 // pred_fallthru
      _
    // Predicated region
    $region30: #{tpu_custom_call.1} parent=1 // pred_check
      _
    $region31: #{tpu_custom_call.1} parent=1 // pred_check_branch
      %84 = sbr.rel (0) target = $region33
    $region32: #{tpu_custom_call.1} parent=1 // pred_region
      %86 = dma.done [#allocation6], 64
    $region33: #{tpu_custom_call.1} parent=1 // pred_fallthru
      _
    // Predicated region
    $region34: #{tpu_custom_call.1} parent=1 // pred_check
      _
    $region35: #{tpu_custom_call.1} parent=1 // pred_check_branch
      %88 = sbr.rel (0) target = $region37
    $region36: #{tpu_custom_call.1} parent=1 // pred_region
      %90 = dma.done [#allocation9], 20480
    $region37: #{tpu_custom_call.1} parent=1 // pred_fallthru
      _
    // Predicated region
    $region38: #{tpu_custom_call.1} parent=1 // pred_check
      _
    $region39: #{tpu_custom_call.1} parent=1 // pred_check_branch
      %92 = sbr.rel (0) target = $region41
    $region40: #{tpu_custom_call.1} parent=1 // pred_region
      %94 = dma.done [#allocation9], 80
    $region41: #{tpu_custom_call.1} parent=1 // pred_fallthru
      _
    %v96 = vld [vmem:[#allocation2] sm:$0xff]
    %v97 = vld [vmem:[#allocation2 + $0x8] sm:$0xff]
    %v98 = vld [vmem:[#allocation2 + $0x10] sm:$0xff]
    %v99 = vld [vmem:[#allocation2 + $0x18] sm:$0xf]
    %v100 = vld [vmem:[#allocation2 + $0x1c] sm:$0xff]
    %v101 = vld [vmem:[#allocation2 + $0x24] sm:$0xff]
    %v102 = vld [vmem:[#allocation2 + $0x2c] sm:$0xff]
    %v103 = vld [vmem:[#allocation2 + $0x34] sm:$0xf]
    %v104 = vld [vmem:[#allocation5] sm:$0xff]
    %v105 = vld [vmem:[#allocation5 + $0x8] sm:$0xff]
    %v106 = vld [vmem:[#allocation5 + $0x10] sm:$0xff]
    %v107 = vld [vmem:[#allocation5 + $0x18] sm:$0xff]
    %v108 = vld [vmem:[#allocation5 + $0x20] sm:$0xff]
    %v109 = vld [vmem:[#allocation5 + $0x28] sm:$0xff]
    %v110 = vld [vmem:[#allocation5 + $0x30] sm:$0xff]
    %v111 = vld [vmem:[#allocation5 + $0x38] sm:$0xff]
    %v112 = vld [vmem:[#allocation5 + $0x40] sm:$0xff]
    %v113 = vld [vmem:[#allocation5 + $0x48] sm:$0xff]
    %v114 = vld [vmem:[#allocation5 + $0x50] sm:$0xff]
    %v115 = vld [vmem:[#allocation5 + $0x58] sm:$0xff]
    %v116 = vld [vmem:[#allocation5 + $0x60] sm:$0xff]
    %v117 = vld [vmem:[#allocation5 + $0x68] sm:$0xff]
    %v118 = vld [vmem:[#allocation5 + $0x70] sm:$0xff]
    %v119 = vld [vmem:[#allocation5 + $0x78] sm:$0xff]
    %v120 = vld [vmem:[#allocation5 + $0x80] sm:$0xff]
    %v121 = vld [vmem:[#allocation5 + $0x88] sm:$0xff]
    %v122 = vld [vmem:[#allocation5 + $0x90] sm:$0xff]
    %v123 = vld [vmem:[#allocation5 + $0x98] sm:$0xff]
    %v124 = vld [vmem:[#allocation5 + $0xa0] sm:$0xff]
    %v125 = vld [vmem:[#allocation5 + $0xa8] sm:$0xff]
    %v126 = vld [vmem:[#allocation5 + $0xb0] sm:$0xff]
    %v127 = vld [vmem:[#allocation5 + $0xb8] sm:$0xff]
    %v128 = vld [vmem:[#allocation5 + $0xc0] sm:$0xff]
    %v129 = vld [vmem:[#allocation5 + $0xc8] sm:$0xff]
    %v130 = vld [vmem:[#allocation5 + $0xd0] sm:$0xff]
    %v131 = vld [vmem:[#allocation5 + $0xd8] sm:$0xff]
    %v132 = vld [vmem:[#allocation5 + $0xe0] sm:$0xff]
    %v133 = vld [vmem:[#allocation5 + $0xe8] sm:$0xff]
    %v134 = vld [vmem:[#allocation5 + $0xf0] sm:$0xff]
    %v135 = vld [vmem:[#allocation5 + $0xf8] sm:$0xff]
    %v136 = vld [vmem:[#allocation5 + $0x100] sm:$0xff]
    %v137 = vld [vmem:[#allocation5 + $0x108] sm:$0xff]
    %v138 = vld [vmem:[#allocation5 + $0x110] sm:$0xff]
    %v139 = vld [vmem:[#allocation5 + $0x118] sm:$0xff]
    %v140 = vld [vmem:[#allocation5 + $0x120] sm:$0xff]
    %v141 = vld [vmem:[#allocation5 + $0x128] sm:$0xff]
    %v142 = vld [vmem:[#allocation5 + $0x130] sm:$0xff]
    %v143 = vld [vmem:[#allocation5 + $0x138] sm:$0xff]
    %v144 = vld [vmem:[#allocation5 + $0x140] sm:$0xff]
    %v145 = vld [vmem:[#allocation5 + $0x148] sm:$0xff]
    %v146 = vld [vmem:[#allocation5 + $0x150] sm:$0xff]
    %v147 = vld [vmem:[#allocation5 + $0x158] sm:$0xff]
    %v148 = vld [vmem:[#allocation5 + $0x160] sm:$0xff]
    %v149 = vld [vmem:[#allocation5 + $0x168] sm:$0xff]
    %v150 = vld [vmem:[#allocation5 + $0x170] sm:$0xff]
    %v151 = vld [vmem:[#allocation5 + $0x178] sm:$0xff]
    %v152 = vld [vmem:[#allocation5 + $0x180] sm:$0xff]
    %v153 = vld [vmem:[#allocation5 + $0x188] sm:$0xff]
    %v154 = vld [vmem:[#allocation5 + $0x190] sm:$0xff]
    %v155 = vld [vmem:[#allocation5 + $0x198] sm:$0xff]
    %v156 = vld [vmem:[#allocation5 + $0x1a0] sm:$0xff]
    %v157 = vld [vmem:[#allocation5 + $0x1a8] sm:$0xff]
    %v158 = vld [vmem:[#allocation5 + $0x1b0] sm:$0xff]
    %v159 = vld [vmem:[#allocation5 + $0x1b8] sm:$0xff]
    %v160 = vld [vmem:[#allocation5 + $0x1c0] sm:$0xff]
    %v161 = vld [vmem:[#allocation5 + $0x1c8] sm:$0xff]
    %v162 = vld [vmem:[#allocation5 + $0x1d0] sm:$0xff]
    %v163 = vld [vmem:[#allocation5 + $0x1d8] sm:$0xff]
    %v164 = vld [vmem:[#allocation5 + $0x1e0] sm:$0xff]
    %v165 = vld [vmem:[#allocation5 + $0x1e8] sm:$0xff]
    %v166 = vld [vmem:[#allocation5 + $0x1f0] sm:$0xff]
    %v167 = vld [vmem:[#allocation5 + $0x1f8] sm:$0xff]
    %v168 = vld [vmem:[#allocation5 + $0x200] sm:$0xff]
    %v169 = vld [vmem:[#allocation5 + $0x208] sm:$0xff]
    %v170 = vld [vmem:[#allocation5 + $0x210] sm:$0xff]
    %v171 = vld [vmem:[#allocation5 + $0x218] sm:$0xff]
    %v172 = vld [vmem:[#allocation5 + $0x220] sm:$0xff]
    %v173 = vld [vmem:[#allocation5 + $0x228] sm:$0xff]
    %v174 = vld [vmem:[#allocation5 + $0x230] sm:$0xff]
    %v175 = vld [vmem:[#allocation5 + $0x238] sm:$0xff]
    %v176 = vld [vmem:[#allocation5 + $0x240] sm:$0xff]
    %v177 = vld [vmem:[#allocation5 + $0x248] sm:$0xff]
    %v178 = vld [vmem:[#allocation5 + $0x250] sm:$0xff]
    %v179 = vld [vmem:[#allocation5 + $0x258] sm:$0xff]
    %v180 = vld [vmem:[#allocation5 + $0x260] sm:$0xff]
    %v181 = vld [vmem:[#allocation5 + $0x268] sm:$0xff]
    %v182 = vld [vmem:[#allocation5 + $0x270] sm:$0xff]
    %v183 = vld [vmem:[#allocation5 + $0x278] sm:$0xff]
    %v184 = vld [vmem:[#allocation5 + $0x280] sm:$0xff]
    %v185 = vld [vmem:[#allocation5 + $0x288] sm:$0xff]
    %v186 = vld [vmem:[#allocation5 + $0x290] sm:$0xff]
    %v187 = vld [vmem:[#allocation5 + $0x298] sm:$0xff]
    %v188 = vld [vmem:[#allocation5 + $0x2a0] sm:$0xff]
    %v189 = vld [vmem:[#allocation5 + $0x2a8] sm:$0xff]
    %v190 = vld [vmem:[#allocation5 + $0x2b0] sm:$0xff]
    %v191 = vld [vmem:[#allocation5 + $0x2b8] sm:$0xff]
    %v192 = vld [vmem:[#allocation5 + $0x2c0] sm:$0xff]
    %v193 = vld [vmem:[#allocation5 + $0x2c8] sm:$0xff]
    %v194 = vld [vmem:[#allocation5 + $0x2d0] sm:$0xff]
    %v195 = vld [vmem:[#allocation5 + $0x2d8] sm:$0xff]
    %v196 = vld [vmem:[#allocation5 + $0x2e0] sm:$0xff]
    %v197 = vld [vmem:[#allocation5 + $0x2e8] sm:$0xff]
    %v198 = vld [vmem:[#allocation5 + $0x2f0] sm:$0xff]
    %v199 = vld [vmem:[#allocation5 + $0x2f8] sm:$0xff]
    %v200 = vld [vmem:[#allocation5 + $0x300] sm:$0xff]
    %v201 = vld [vmem:[#allocation5 + $0x308] sm:$0xff]
    %v202 = vld [vmem:[#allocation5 + $0x310] sm:$0xff]
    %v203 = vld [vmem:[#allocation5 + $0x318] sm:$0xff]
    %v204 = vld [vmem:[#allocation5 + $0x320] sm:$0xff]
    %v205 = vld [vmem:[#allocation5 + $0x328] sm:$0xff]
    %v206 = vld [vmem:[#allocation5 + $0x330] sm:$0xff]
    %v207 = vld [vmem:[#allocation5 + $0x338] sm:$0xff]
    %v208 = vld [vmem:[#allocation5 + $0x340] sm:$0xff]
    %v209 = vld [vmem:[#allocation5 + $0x348] sm:$0xff]
    %v210 = vld [vmem:[#allocation5 + $0x350] sm:$0xff]
    %v211 = vld [vmem:[#allocation5 + $0x358] sm:$0xff]
    %v212 = vld [vmem:[#allocation5 + $0x360] sm:$0xff]
    %v213 = vld [vmem:[#allocation5 + $0x368] sm:$0xff]
    %v214 = vld [vmem:[#allocation5 + $0x370] sm:$0xff]
    %v215 = vld [vmem:[#allocation5 + $0x378] sm:$0xff]
    %v216 = vld [vmem:[#allocation5 + $0x380] sm:$0xff]
    %v217 = vld [vmem:[#allocation5 + $0x388] sm:$0xff]
    %v218 = vld [vmem:[#allocation5 + $0x390] sm:$0xff]
    %v219 = vld [vmem:[#allocation5 + $0x398] sm:$0xff]
    %v220 = vld [vmem:[#allocation5 + $0x3a0] sm:$0xff]
    %v221 = vld [vmem:[#allocation5 + $0x3a8] sm:$0xff]
    %v222 = vld [vmem:[#allocation5 + $0x3b0] sm:$0xff]
    %v223 = vld [vmem:[#allocation5 + $0x3b8] sm:$0xff]
    %v224 = vld [vmem:[#allocation5 + $0x3c0] sm:$0xff]
    %v225 = vld [vmem:[#allocation5 + $0x3c8] sm:$0xff]
    %v226 = vld [vmem:[#allocation5 + $0x3d0] sm:$0xff]
    %v227 = vld [vmem:[#allocation5 + $0x3d8] sm:$0xff]
    %v228 = vld [vmem:[#allocation5 + $0x3e0] sm:$0xff]
    %v229 = vld [vmem:[#allocation5 + $0x3e8] sm:$0xff]
    %v230 = vld [vmem:[#allocation5 + $0x3f0] sm:$0xff]
    %v231 = vld [vmem:[#allocation5 + $0x3f8] sm:$0xff]
    %v232 = vld [vmem:[#allocation5 + $0x400] sm:$0xff]
    %v233 = vld [vmem:[#allocation5 + $0x408] sm:$0xff]
    %v234 = vld [vmem:[#allocation5 + $0x410] sm:$0xff]
    %v235 = vld [vmem:[#allocation5 + $0x418] sm:$0xff]
    %v236 = vld [vmem:[#allocation5 + $0x420] sm:$0xff]
    %v237 = vld [vmem:[#allocation5 + $0x428] sm:$0xff]
    %v238 = vld [vmem:[#allocation5 + $0x430] sm:$0xff]
    %v239 = vld [vmem:[#allocation5 + $0x438] sm:$0xff]
    %v240 = vld [vmem:[#allocation5 + $0x440] sm:$0xff]
    %v241 = vld [vmem:[#allocation5 + $0x448] sm:$0xff]
    %v242 = vld [vmem:[#allocation5 + $0x450] sm:$0xff]
    %v243 = vld [vmem:[#allocation5 + $0x458] sm:$0xff]
    %v244 = vld [vmem:[#allocation5 + $0x460] sm:$0xff]
    %v245 = vld [vmem:[#allocation5 + $0x468] sm:$0xff]
    %v246 = vld [vmem:[#allocation5 + $0x470] sm:$0xff]
    %v247 = vld [vmem:[#allocation5 + $0x478] sm:$0xff]
    %v248 = vld [vmem:[#allocation5 + $0x480] sm:$0xff]
    %v249 = vld [vmem:[#allocation5 + $0x488] sm:$0xff]
    %v250 = vld [vmem:[#allocation5 + $0x490] sm:$0xff]
    %v251 = vld [vmem:[#allocation5 + $0x498] sm:$0xff]
    %v252 = vld [vmem:[#allocation5 + $0x4a0] sm:$0xff]
    %v253 = vld [vmem:[#allocation5 + $0x4a8] sm:$0xff]
    %v254 = vld [vmem:[#allocation5 + $0x4b0] sm:$0xff]
    %v255 = vld [vmem:[#allocation5 + $0x4b8] sm:$0xff]
    %v256 = vld [vmem:[#allocation5 + $0x4c0] sm:$0xff]
    %v257 = vld [vmem:[#allocation5 + $0x4c8] sm:$0xff]
    %v258 = vld [vmem:[#allocation5 + $0x4d0] sm:$0xff]
    %v259 = vld [vmem:[#allocation5 + $0x4d8] sm:$0xff]
    %v260 = vld [vmem:[#allocation5 + $0x4e0] sm:$0xff]
    %v261 = vld [vmem:[#allocation5 + $0x4e8] sm:$0xff]
    %v262 = vld [vmem:[#allocation5 + $0x4f0] sm:$0xff]
    %v263 = vld [vmem:[#allocation5 + $0x4f8] sm:$0xff]
    %v264 = vld [vmem:[#allocation5 + $0x500] sm:$0xff]
    %v265 = vld [vmem:[#allocation5 + $0x508] sm:$0xff]
    %v266 = vld [vmem:[#allocation5 + $0x510] sm:$0xff]
    %v267 = vld [vmem:[#allocation5 + $0x518] sm:$0xff]
    %v268 = vld [vmem:[#allocation5 + $0x520] sm:$0xff]
    %v269 = vld [vmem:[#allocation5 + $0x528] sm:$0xff]
    %v270 = vld [vmem:[#allocation5 + $0x530] sm:$0xff]
    %v271 = vld [vmem:[#allocation5 + $0x538] sm:$0xff]
    %v272 = vld [vmem:[#allocation5 + $0x540] sm:$0xff]
    %v273 = vld [vmem:[#allocation5 + $0x548] sm:$0xff]
    %v274 = vld [vmem:[#allocation5 + $0x550] sm:$0xff]
    %v275 = vld [vmem:[#allocation5 + $0x558] sm:$0xff]
    %v276 = vld [vmem:[#allocation5 + $0x560] sm:$0xff]
    %v277 = vld [vmem:[#allocation5 + $0x568] sm:$0xff]
    %v278 = vld [vmem:[#allocation5 + $0x570] sm:$0xff]
    %v279 = vld [vmem:[#allocation5 + $0x578] sm:$0xff]
    %v280 = vld [vmem:[#allocation5 + $0x580] sm:$0xff]
    %v281 = vld [vmem:[#allocation5 + $0x588] sm:$0xff]
    %v282 = vld [vmem:[#allocation5 + $0x590] sm:$0xff]
    %v283 = vld [vmem:[#allocation5 + $0x598] sm:$0xff]
    %v284 = vld [vmem:[#allocation5 + $0x5a0] sm:$0xff]
    %v285 = vld [vmem:[#allocation5 + $0x5a8] sm:$0xff]
    %v286 = vld [vmem:[#allocation5 + $0x5b0] sm:$0xff]
    %v287 = vld [vmem:[#allocation5 + $0x5b8] sm:$0xff]
    %v288 = vld [vmem:[#allocation5 + $0x5c0] sm:$0xff]
    %v289 = vld [vmem:[#allocation5 + $0x5c8] sm:$0xff]
    %v290 = vld [vmem:[#allocation5 + $0x5d0] sm:$0xff]
    %v291 = vld [vmem:[#allocation5 + $0x5d8] sm:$0xff]
    %v292 = vld [vmem:[#allocation5 + $0x5e0] sm:$0xff]
    %v293 = vld [vmem:[#allocation5 + $0x5e8] sm:$0xff]
    %v294 = vld [vmem:[#allocation5 + $0x5f0] sm:$0xff]
    %v295 = vld [vmem:[#allocation5 + $0x5f8] sm:$0xff]
    %v296 = vld [vmem:[#allocation5 + $0x600] sm:$0xff]
    %v297 = vld [vmem:[#allocation5 + $0x608] sm:$0xff]
    %v298 = vld [vmem:[#allocation5 + $0x610] sm:$0xff]
    %v299 = vld [vmem:[#allocation5 + $0x618] sm:$0xff]
    %v300 = vld [vmem:[#allocation7] sm:$0xf]
    %v302 = vperm.slane %v300, 0
    %v303 = vperm.slane %v300, 1
    %v304 = vperm.slane %v300, 2
    %v305 = vperm.slane %v300, 3
    %v318 = vunpack.c.l.b16 %v96
    %v319 = vunpack.c.h.b16 %v96
    %v320 = vunpack.c.l.b16 %v97
    %v321 = vunpack.c.h.b16 %v97
    %v322 = vunpack.c.l.b16 %v98
    %v323 = vunpack.c.h.b16 %v98
    %v324 = vunpack.c.l.b16 %v99
    %v325 = vunpack.c.l.b16 %v100
    %v326 = vunpack.c.h.b16 %v100
    %v327 = vunpack.c.l.b16 %v101
    %v328 = vunpack.c.h.b16 %v101
    %v329 = vunpack.c.l.b16 %v102
    %v330 = vunpack.c.h.b16 %v102
    %v331 = vunpack.c.l.b16 %v103
    %v332 = vpack.c.b16 %v325, %v318
    %v333 = vpack.c.b16 %v326, %v319
    %v334 = vpack.c.b16 %v327, %v320
    %v335 = vpack.c.b16 %v328, %v321
    %v336 = vpack.c.b16 %v329, %v322
    %v337 = vpack.c.b16 %v330, %v323
    %v338 = vpack.c.b16 %v331, %v324
    %v541 = vunpack.c.l.b16 %v104
    %v542 = vunpack.c.h.b16 %v104
    %v543 = vunpack.c.l.b16 %v105
    %v544 = vunpack.c.h.b16 %v105
    %v545 = vunpack.c.l.b16 %v106
    %v546 = vunpack.c.h.b16 %v106
    %v547 = vunpack.c.l.b16 %v107
    %v548 = vunpack.c.h.b16 %v107
    %v549 = vunpack.c.l.b16 %v108
    %v550 = vunpack.c.h.b16 %v108
    %v551 = vunpack.c.l.b16 %v109
    %v552 = vunpack.c.h.b16 %v109
    %v553 = vunpack.c.l.b16 %v110
    %v554 = vunpack.c.h.b16 %v110
    %v555 = vunpack.c.l.b16 %v111
    %v556 = vunpack.c.h.b16 %v111
    %v557 = vunpack.c.l.b16 %v112
    %v558 = vunpack.c.h.b16 %v112
    %v559 = vunpack.c.l.b16 %v113
    %v560 = vunpack.c.h.b16 %v113
    %v561 = vunpack.c.l.b16 %v114
    %v562 = vunpack.c.h.b16 %v114
    %v563 = vunpack.c.l.b16 %v115
    %v564 = vunpack.c.h.b16 %v115
    %v565 = vunpack.c.l.b16 %v116
    %v566 = vunpack.c.h.b16 %v116
    %v567 = vunpack.c.l.b16 %v117
    %v568 = vunpack.c.h.b16 %v117
    %v569 = vunpack.c.l.b16 %v118
    %v570 = vunpack.c.h.b16 %v118
    %v571 = vunpack.c.l.b16 %v119
    %v572 = vunpack.c.h.b16 %v119
    %v573 = vunpack.c.l.b16 %v120
    %v574 = vunpack.c.h.b16 %v120
    %v575 = vunpack.c.l.b16 %v121
    %v576 = vunpack.c.h.b16 %v121
    %v577 = vunpack.c.l.b16 %v122
    %v578 = vunpack.c.h.b16 %v122
    %v579 = vunpack.c.l.b16 %v123
    %v580 = vunpack.c.h.b16 %v123
    %v581 = vunpack.c.l.b16 %v124
    %v582 = vunpack.c.h.b16 %v124
    %v583 = vunpack.c.l.b16 %v125
    %v584 = vunpack.c.h.b16 %v125
    %v585 = vunpack.c.l.b16 %v126
    %v586 = vunpack.c.h.b16 %v126
    %v587 = vunpack.c.l.b16 %v127
    %v588 = vunpack.c.h.b16 %v127
    %v589 = vunpack.c.l.b16 %v128
    %v590 = vunpack.c.h.b16 %v128
    %v591 = vunpack.c.l.b16 %v129
    %v592 = vunpack.c.h.b16 %v129
    %v593 = vunpack.c.l.b16 %v130
    %v594 = vunpack.c.h.b16 %v130
    %v595 = vunpack.c.l.b16 %v131
    %v596 = vunpack.c.h.b16 %v131
    %v597 = vunpack.c.l.b16 %v132
    %v598 = vunpack.c.h.b16 %v132
    %v599 = vunpack.c.l.b16 %v133
    %v600 = vunpack.c.h.b16 %v133
    %v601 = vunpack.c.l.b16 %v134
    %v602 = vunpack.c.h.b16 %v134
    %v603 = vunpack.c.l.b16 %v135
    %v604 = vunpack.c.h.b16 %v135
    %v605 = vunpack.c.l.b16 %v136
    %v606 = vunpack.c.h.b16 %v136
    %v607 = vunpack.c.l.b16 %v137
    %v608 = vunpack.c.h.b16 %v137
    %v609 = vunpack.c.l.b16 %v138
    %v610 = vunpack.c.h.b16 %v138
    %v611 = vunpack.c.l.b16 %v139
    %v612 = vunpack.c.h.b16 %v139
    %v613 = vunpack.c.l.b16 %v140
    %v614 = vunpack.c.h.b16 %v140
    %v615 = vunpack.c.l.b16 %v141
    %v616 = vunpack.c.h.b16 %v141
    %v617 = vunpack.c.l.b16 %v142
    %v618 = vunpack.c.h.b16 %v142
    %v619 = vunpack.c.l.b16 %v143
    %v620 = vunpack.c.h.b16 %v143
    %v621 = vunpack.c.l.b16 %v144
    %v622 = vunpack.c.h.b16 %v144
    %v623 = vunpack.c.l.b16 %v145
    %v624 = vunpack.c.h.b16 %v145
    %v625 = vunpack.c.l.b16 %v146
    %v626 = vunpack.c.h.b16 %v146
    %v627 = vunpack.c.l.b16 %v147
    %v628 = vunpack.c.h.b16 %v147
    %v629 = vunpack.c.l.b16 %v148
    %v630 = vunpack.c.h.b16 %v148
    %v631 = vunpack.c.l.b16 %v149
    %v632 = vunpack.c.h.b16 %v149
    %v633 = vunpack.c.l.b16 %v150
    %v634 = vunpack.c.h.b16 %v150
    %v635 = vunpack.c.l.b16 %v151
    %v636 = vunpack.c.h.b16 %v151
    %v637 = vunpack.c.l.b16 %v152
    %v638 = vunpack.c.h.b16 %v152
    %v639 = vunpack.c.l.b16 %v153
    %v640 = vunpack.c.h.b16 %v153
    %v641 = vunpack.c.l.b16 %v154
    %v642 = vunpack.c.h.b16 %v154
    %v643 = vunpack.c.l.b16 %v155
    %v644 = vunpack.c.h.b16 %v155
    %v645 = vunpack.c.l.b16 %v156
    %v646 = vunpack.c.h.b16 %v156
    %v647 = vunpack.c.l.b16 %v157
    %v648 = vunpack.c.h.b16 %v157
    %v649 = vunpack.c.l.b16 %v158
    %v650 = vunpack.c.h.b16 %v158
    %v651 = vunpack.c.l.b16 %v159
    %v652 = vunpack.c.h.b16 %v159
    %v653 = vunpack.c.l.b16 %v160
    %v654 = vunpack.c.h.b16 %v160
    %v655 = vunpack.c.l.b16 %v161
    %v656 = vunpack.c.h.b16 %v161
    %v657 = vunpack.c.l.b16 %v162
    %v658 = vunpack.c.h.b16 %v162
    %v659 = vunpack.c.l.b16 %v163
    %v660 = vunpack.c.h.b16 %v163
    %v661 = vunpack.c.l.b16 %v164
    %v662 = vunpack.c.h.b16 %v164
    %v663 = vunpack.c.l.b16 %v165
    %v664 = vunpack.c.h.b16 %v165
    %v665 = vunpack.c.l.b16 %v166
    %v666 = vunpack.c.h.b16 %v166
    %v667 = vunpack.c.l.b16 %v167
    %v668 = vunpack.c.h.b16 %v167
    %v669 = vunpack.c.l.b16 %v168
    %v670 = vunpack.c.h.b16 %v168
    %v671 = vunpack.c.l.b16 %v169
    %v672 = vunpack.c.h.b16 %v169
    %v673 = vunpack.c.l.b16 %v170
    %v674 = vunpack.c.h.b16 %v170
    %v675 = vunpack.c.l.b16 %v171
    %v676 = vunpack.c.h.b16 %v171
    %v677 = vunpack.c.l.b16 %v172
    %v678 = vunpack.c.h.b16 %v172
    %v679 = vunpack.c.l.b16 %v173
    %v680 = vunpack.c.h.b16 %v173
    %v681 = vunpack.c.l.b16 %v174
    %v682 = vunpack.c.h.b16 %v174
    %v683 = vunpack.c.l.b16 %v175
    %v684 = vunpack.c.h.b16 %v175
    %v685 = vunpack.c.l.b16 %v176
    %v686 = vunpack.c.h.b16 %v176
    %v687 = vunpack.c.l.b16 %v177
    %v688 = vunpack.c.h.b16 %v177
    %v689 = vunpack.c.l.b16 %v178
    %v690 = vunpack.c.h.b16 %v178
    %v691 = vunpack.c.l.b16 %v179
    %v692 = vunpack.c.h.b16 %v179
    %v693 = vunpack.c.l.b16 %v180
    %v694 = vunpack.c.h.b16 %v180
    %v695 = vunpack.c.l.b16 %v181
    %v696 = vunpack.c.h.b16 %v181
    %v697 = vunpack.c.l.b16 %v182
    %v698 = vunpack.c.h.b16 %v182
    %v699 = vunpack.c.l.b16 %v183
    %v700 = vunpack.c.h.b16 %v183
    %v701 = vunpack.c.l.b16 %v184
    %v702 = vunpack.c.h.b16 %v184
    %v703 = vunpack.c.l.b16 %v185
    %v704 = vunpack.c.h.b16 %v185
    %v705 = vunpack.c.l.b16 %v186
    %v706 = vunpack.c.h.b16 %v186
    %v707 = vunpack.c.l.b16 %v187
    %v708 = vunpack.c.h.b16 %v187
    %v709 = vunpack.c.l.b16 %v188
    %v710 = vunpack.c.h.b16 %v188
    %v711 = vunpack.c.l.b16 %v189
    %v712 = vunpack.c.h.b16 %v189
    %v713 = vunpack.c.l.b16 %v190
    %v714 = vunpack.c.h.b16 %v190
    %v715 = vunpack.c.l.b16 %v191
    %v716 = vunpack.c.h.b16 %v191
    %v717 = vunpack.c.l.b16 %v192
    %v718 = vunpack.c.h.b16 %v192
    %v719 = vunpack.c.l.b16 %v193
    %v720 = vunpack.c.h.b16 %v193
    %v721 = vunpack.c.l.b16 %v194
    %v722 = vunpack.c.h.b16 %v194
    %v723 = vunpack.c.l.b16 %v195
    %v724 = vunpack.c.h.b16 %v195
    %v725 = vunpack.c.l.b16 %v196
    %v726 = vunpack.c.h.b16 %v196
    %v727 = vunpack.c.l.b16 %v197
    %v728 = vunpack.c.h.b16 %v197
    %v729 = vunpack.c.l.b16 %v198
    %v730 = vunpack.c.h.b16 %v198
    %v731 = vunpack.c.l.b16 %v199
    %v732 = vunpack.c.h.b16 %v199
    %v733 = vunpack.c.l.b16 %v200
    %v734 = vunpack.c.h.b16 %v200
    %v735 = vunpack.c.l.b16 %v201
    %v736 = vunpack.c.h.b16 %v201
    %v737 = vunpack.c.l.b16 %v202
    %v738 = vunpack.c.h.b16 %v202
    %v739 = vunpack.c.l.b16 %v203
    %v740 = vunpack.c.h.b16 %v203
    %v741 = vunpack.c.l.b16 %v204
    %v742 = vunpack.c.h.b16 %v204
    %v743 = vunpack.c.l.b16 %v205
    %v744 = vunpack.c.h.b16 %v205
    %v745 = vunpack.c.l.b16 %v206
    %v746 = vunpack.c.h.b16 %v206
    %v747 = vunpack.c.l.b16 %v207
    %v748 = vunpack.c.h.b16 %v207
    %v749 = vunpack.c.l.b16 %v208
    %v750 = vunpack.c.h.b16 %v208
    %v751 = vunpack.c.l.b16 %v209
    %v752 = vunpack.c.h.b16 %v209
    %v753 = vunpack.c.l.b16 %v210
    %v754 = vunpack.c.h.b16 %v210
    %v755 = vunpack.c.l.b16 %v211
    %v756 = vunpack.c.h.b16 %v211
    %v757 = vunpack.c.l.b16 %v212
    %v758 = vunpack.c.h.b16 %v212
    %v759 = vunpack.c.l.b16 %v213
    %v760 = vunpack.c.h.b16 %v213
    %v761 = vunpack.c.l.b16 %v214
    %v762 = vunpack.c.h.b16 %v214
    %v763 = vunpack.c.l.b16 %v215
    %v764 = vunpack.c.h.b16 %v215
    %v765 = vunpack.c.l.b16 %v216
    %v766 = vunpack.c.h.b16 %v216
    %v767 = vunpack.c.l.b16 %v217
    %v768 = vunpack.c.h.b16 %v217
    %v769 = vunpack.c.l.b16 %v218
    %v770 = vunpack.c.h.b16 %v218
    %v771 = vunpack.c.l.b16 %v219
    %v772 = vunpack.c.h.b16 %v219
    %v773 = vunpack.c.l.b16 %v220
    %v774 = vunpack.c.h.b16 %v220
    %v775 = vunpack.c.l.b16 %v221
    %v776 = vunpack.c.h.b16 %v221
    %v777 = vunpack.c.l.b16 %v222
    %v778 = vunpack.c.h.b16 %v222
    %v779 = vunpack.c.l.b16 %v223
    %v780 = vunpack.c.h.b16 %v223
    %v781 = vunpack.c.l.b16 %v224
    %v782 = vunpack.c.h.b16 %v224
    %v783 = vunpack.c.l.b16 %v225
    %v784 = vunpack.c.h.b16 %v225
    %v785 = vunpack.c.l.b16 %v226
    %v786 = vunpack.c.h.b16 %v226
    %v787 = vunpack.c.l.b16 %v227
    %v788 = vunpack.c.h.b16 %v227
    %v789 = vunpack.c.l.b16 %v228
    %v790 = vunpack.c.h.b16 %v228
    %v791 = vunpack.c.l.b16 %v229
    %v792 = vunpack.c.h.b16 %v229
    %v793 = vunpack.c.l.b16 %v230
    %v794 = vunpack.c.h.b16 %v230
    %v795 = vunpack.c.l.b16 %v231
    %v796 = vunpack.c.h.b16 %v231
    %v797 = vunpack.c.l.b16 %v232
    %v798 = vunpack.c.h.b16 %v232
    %v799 = vunpack.c.l.b16 %v233
    %v800 = vunpack.c.h.b16 %v233
    %v801 = vunpack.c.l.b16 %v234
    %v802 = vunpack.c.h.b16 %v234
    %v803 = vunpack.c.l.b16 %v235
    %v804 = vunpack.c.h.b16 %v235
    %v805 = vunpack.c.l.b16 %v236
    %v806 = vunpack.c.h.b16 %v236
    %v807 = vunpack.c.l.b16 %v237
    %v808 = vunpack.c.h.b16 %v237
    %v809 = vunpack.c.l.b16 %v238
    %v810 = vunpack.c.h.b16 %v238
    %v811 = vunpack.c.l.b16 %v239
    %v812 = vunpack.c.h.b16 %v239
    %v813 = vunpack.c.l.b16 %v240
    %v814 = vunpack.c.h.b16 %v240
    %v815 = vunpack.c.l.b16 %v241
    %v816 = vunpack.c.h.b16 %v241
    %v817 = vunpack.c.l.b16 %v242
    %v818 = vunpack.c.h.b16 %v242
    %v819 = vunpack.c.l.b16 %v243
    %v820 = vunpack.c.h.b16 %v243
    %v821 = vunpack.c.l.b16 %v244
    %v822 = vunpack.c.h.b16 %v244
    %v823 = vunpack.c.l.b16 %v245
    %v824 = vunpack.c.h.b16 %v245
    %v825 = vunpack.c.l.b16 %v246
    %v826 = vunpack.c.h.b16 %v246
    %v827 = vunpack.c.l.b16 %v247
    %v828 = vunpack.c.h.b16 %v247
    %v829 = vunpack.c.l.b16 %v248
    %v830 = vunpack.c.h.b16 %v248
    %v831 = vunpack.c.l.b16 %v249
    %v832 = vunpack.c.h.b16 %v249
    %v833 = vunpack.c.l.b16 %v250
    %v834 = vunpack.c.h.b16 %v250
    %v835 = vunpack.c.l.b16 %v251
    %v836 = vunpack.c.h.b16 %v251
    %v837 = vunpack.c.l.b16 %v252
    %v838 = vunpack.c.h.b16 %v252
    %v839 = vunpack.c.l.b16 %v253
    %v840 = vunpack.c.h.b16 %v253
    %v841 = vunpack.c.l.b16 %v254
    %v842 = vunpack.c.h.b16 %v254
    %v843 = vunpack.c.l.b16 %v255
    %v844 = vunpack.c.h.b16 %v255
    %v845 = vunpack.c.l.b16 %v256
    %v846 = vunpack.c.h.b16 %v256
    %v847 = vunpack.c.l.b16 %v257
    %v848 = vunpack.c.h.b16 %v257
    %v849 = vunpack.c.l.b16 %v258
    %v850 = vunpack.c.h.b16 %v258
    %v851 = vunpack.c.l.b16 %v259
    %v852 = vunpack.c.h.b16 %v259
    %v853 = vunpack.c.l.b16 %v260
    %v854 = vunpack.c.h.b16 %v260
    %v855 = vunpack.c.l.b16 %v261
    %v856 = vunpack.c.h.b16 %v261
    %v857 = vunpack.c.l.b16 %v262
    %v858 = vunpack.c.h.b16 %v262
    %v859 = vunpack.c.l.b16 %v263
    %v860 = vunpack.c.h.b16 %v263
    %v861 = vunpack.c.l.b16 %v264
    %v862 = vunpack.c.h.b16 %v264
    %v863 = vunpack.c.l.b16 %v265
    %v864 = vunpack.c.h.b16 %v265
    %v865 = vunpack.c.l.b16 %v266
    %v866 = vunpack.c.h.b16 %v266
    %v867 = vunpack.c.l.b16 %v267
    %v868 = vunpack.c.h.b16 %v267
    %v869 = vunpack.c.l.b16 %v268
    %v870 = vunpack.c.h.b16 %v268
    %v871 = vunpack.c.l.b16 %v269
    %v872 = vunpack.c.h.b16 %v269
    %v873 = vunpack.c.l.b16 %v270
    %v874 = vunpack.c.h.b16 %v270
    %v875 = vunpack.c.l.b16 %v271
    %v876 = vunpack.c.h.b16 %v271
    %v877 = vunpack.c.l.b16 %v272
    %v878 = vunpack.c.h.b16 %v272
    %v879 = vunpack.c.l.b16 %v273
    %v880 = vunpack.c.h.b16 %v273
    %v881 = vunpack.c.l.b16 %v274
    %v882 = vunpack.c.h.b16 %v274
    %v883 = vunpack.c.l.b16 %v275
    %v884 = vunpack.c.h.b16 %v275
    %v885 = vunpack.c.l.b16 %v276
    %v886 = vunpack.c.h.b16 %v276
    %v887 = vunpack.c.l.b16 %v277
    %v888 = vunpack.c.h.b16 %v277
    %v889 = vunpack.c.l.b16 %v278
    %v890 = vunpack.c.h.b16 %v278
    %v891 = vunpack.c.l.b16 %v279
    %v892 = vunpack.c.h.b16 %v279
    %v893 = vunpack.c.l.b16 %v280
    %v894 = vunpack.c.h.b16 %v280
    %v895 = vunpack.c.l.b16 %v281
    %v896 = vunpack.c.h.b16 %v281
    %v897 = vunpack.c.l.b16 %v282
    %v898 = vunpack.c.h.b16 %v282
    %v899 = vunpack.c.l.b16 %v283
    %v900 = vunpack.c.h.b16 %v283
    %v901 = vunpack.c.l.b16 %v284
    %v902 = vunpack.c.h.b16 %v284
    %v903 = vunpack.c.l.b16 %v285
    %v904 = vunpack.c.h.b16 %v285
    %v905 = vunpack.c.l.b16 %v286
    %v906 = vunpack.c.h.b16 %v286
    %v907 = vunpack.c.l.b16 %v287
    %v908 = vunpack.c.h.b16 %v287
    %v909 = vunpack.c.l.b16 %v288
    %v910 = vunpack.c.h.b16 %v288
    %v911 = vunpack.c.l.b16 %v289
    %v912 = vunpack.c.h.b16 %v289
    %v913 = vunpack.c.l.b16 %v290
    %v914 = vunpack.c.h.b16 %v290
    %v915 = vunpack.c.l.b16 %v291
    %v916 = vunpack.c.h.b16 %v291
    %v917 = vunpack.c.l.b16 %v292
    %v918 = vunpack.c.h.b16 %v292
    %v919 = vunpack.c.l.b16 %v293
    %v920 = vunpack.c.h.b16 %v293
    %v921 = vunpack.c.l.b16 %v294
    %v922 = vunpack.c.h.b16 %v294
    %v923 = vunpack.c.l.b16 %v295
    %v924 = vunpack.c.h.b16 %v295
    %v925 = vunpack.c.l.b16 %v296
    %v926 = vunpack.c.h.b16 %v296
    %v927 = vunpack.c.l.b16 %v297
    %v928 = vunpack.c.h.b16 %v297
    %v929 = vunpack.c.l.b16 %v298
    %v930 = vunpack.c.h.b16 %v298
    %v931 = vunpack.c.l.b16 %v299
    %v932 = vunpack.c.h.b16 %v299
    %v933 = vpack.c.b16 %v545, %v541
    %v934 = vpack.c.b16 %v546, %v542
    %v935 = vpack.c.b16 %v547, %v543
    %v936 = vpack.c.b16 %v548, %v544
    %v937 = vpack.c.b16 %v553, %v549
    %v938 = vpack.c.b16 %v554, %v550
    %v939 = vpack.c.b16 %v555, %v551
    %v940 = vpack.c.b16 %v556, %v552
    %v941 = vpack.c.b16 %v561, %v557
    %v942 = vpack.c.b16 %v562, %v558
    %v943 = vpack.c.b16 %v563, %v559
    %v944 = vpack.c.b16 %v564, %v560
    %v945 = vpack.c.b16 %v569, %v565
    %v946 = vpack.c.b16 %v570, %v566
    %v947 = vpack.c.b16 %v571, %v567
    %v948 = vpack.c.b16 %v572, %v568
    %v949 = vpack.c.b16 %v577, %v573
    %v950 = vpack.c.b16 %v578, %v574
    %v951 = vpack.c.b16 %v579, %v575
    %v952 = vpack.c.b16 %v580, %v576
    %v953 = vpack.c.b16 %v585, %v581
    %v954 = vpack.c.b16 %v586, %v582
    %v955 = vpack.c.b16 %v587, %v583
    %v956 = vpack.c.b16 %v588, %v584
    %v957 = vpack.c.b16 %v593, %v589
    %v958 = vpack.c.b16 %v594, %v590
    %v959 = vpack.c.b16 %v595, %v591
    %v960 = vpack.c.b16 %v596, %v592
    %v961 = vpack.c.b16 %v601, %v597
    %v962 = vpack.c.b16 %v602, %v598
    %v963 = vpack.c.b16 %v603, %v599
    %v964 = vpack.c.b16 %v604, %v600
    %v965 = vpack.c.b16 %v609, %v605
    %v966 = vpack.c.b16 %v610, %v606
    %v967 = vpack.c.b16 %v611, %v607
    %v968 = vpack.c.b16 %v612, %v608
    %v969 = vpack.c.b16 %v617, %v613
    %v970 = vpack.c.b16 %v618, %v614
    %v971 = vpack.c.b16 %v619, %v615
    %v972 = vpack.c.b16 %v620, %v616
    %v973 = vpack.c.b16 %v625, %v621
    %v974 = vpack.c.b16 %v626, %v622
    %v975 = vpack.c.b16 %v627, %v623
    %v976 = vpack.c.b16 %v628, %v624
    %v977 = vpack.c.b16 %v633, %v629
    %v978 = vpack.c.b16 %v634, %v630
    %v979 = vpack.c.b16 %v635, %v631
    %v980 = vpack.c.b16 %v636, %v632
    %v981 = vpack.c.b16 %v641, %v637
    %v982 = vpack.c.b16 %v642, %v638
    %v983 = vpack.c.b16 %v643, %v639
    %v984 = vpack.c.b16 %v644, %v640
    %v985 = vpack.c.b16 %v649, %v645
    %v986 = vpack.c.b16 %v650, %v646
    %v987 = vpack.c.b16 %v651, %v647
    %v988 = vpack.c.b16 %v652, %v648
    %v989 = vpack.c.b16 %v657, %v653
    %v990 = vpack.c.b16 %v658, %v654
    %v991 = vpack.c.b16 %v659, %v655
    %v992 = vpack.c.b16 %v660, %v656
    %v993 = vpack.c.b16 %v665, %v661
    %v994 = vpack.c.b16 %v666, %v662
    %v995 = vpack.c.b16 %v667, %v663
    %v996 = vpack.c.b16 %v668, %v664
    %v997 = vpack.c.b16 %v673, %v669
    %v998 = vpack.c.b16 %v674, %v670
    %v999 = vpack.c.b16 %v675, %v671
    %v1000 = vpack.c.b16 %v676, %v672
    %v1001 = vpack.c.b16 %v681, %v677
    %v1002 = vpack.c.b16 %v682, %v678
    %v1003 = vpack.c.b16 %v683, %v679
    %v1004 = vpack.c.b16 %v684, %v680
    %v1005 = vpack.c.b16 %v689, %v685
    %v1006 = vpack.c.b16 %v690, %v686
    %v1007 = vpack.c.b16 %v691, %v687
    %v1008 = vpack.c.b16 %v692, %v688
    %v1009 = vpack.c.b16 %v697, %v693
    %v1010 = vpack.c.b16 %v698, %v694
    %v1011 = vpack.c.b16 %v699, %v695
    %v1012 = vpack.c.b16 %v700, %v696
    %v1013 = vpack.c.b16 %v705, %v701
    %v1014 = vpack.c.b16 %v706, %v702
    %v1015 = vpack.c.b16 %v707, %v703
    %v1016 = vpack.c.b16 %v708, %v704
    %v1017 = vpack.c.b16 %v713, %v709
    %v1018 = vpack.c.b16 %v714, %v710
    %v1019 = vpack.c.b16 %v715, %v711
    %v1020 = vpack.c.b16 %v716, %v712
    %v1021 = vpack.c.b16 %v721, %v717
    %v1022 = vpack.c.b16 %v722, %v718
    %v1023 = vpack.c.b16 %v723, %v719
    %v1024 = vpack.c.b16 %v724, %v720
    %v1025 = vpack.c.b16 %v729, %v725
    %v1026 = vpack.c.b16 %v730, %v726
    %v1027 = vpack.c.b16 %v731, %v727
    %v1028 = vpack.c.b16 %v732, %v728
    %v1029 = vpack.c.b16 %v737, %v733
    %v1030 = vpack.c.b16 %v738, %v734
    %v1031 = vpack.c.b16 %v739, %v735
    %v1032 = vpack.c.b16 %v740, %v736
    %v1033 = vpack.c.b16 %v745, %v741
    %v1034 = vpack.c.b16 %v746, %v742
    %v1035 = vpack.c.b16 %v747, %v743
    %v1036 = vpack.c.b16 %v748, %v744
    %v1037 = vpack.c.b16 %v753, %v749
    %v1038 = vpack.c.b16 %v754, %v750
    %v1039 = vpack.c.b16 %v755, %v751
    %v1040 = vpack.c.b16 %v756, %v752
    %v1041 = vpack.c.b16 %v761, %v757
    %v1042 = vpack.c.b16 %v762, %v758
    %v1043 = vpack.c.b16 %v763, %v759
    %v1044 = vpack.c.b16 %v764, %v760
    %v1045 = vpack.c.b16 %v769, %v765
    %v1046 = vpack.c.b16 %v770, %v766
    %v1047 = vpack.c.b16 %v771, %v767
    %v1048 = vpack.c.b16 %v772, %v768
    %v1049 = vpack.c.b16 %v777, %v773
    %v1050 = vpack.c.b16 %v778, %v774
    %v1051 = vpack.c.b16 %v779, %v775
    %v1052 = vpack.c.b16 %v780, %v776
    %v1053 = vpack.c.b16 %v785, %v781
    %v1054 = vpack.c.b16 %v786, %v782
    %v1055 = vpack.c.b16 %v787, %v783
    %v1056 = vpack.c.b16 %v788, %v784
    %v1057 = vpack.c.b16 %v793, %v789
    %v1058 = vpack.c.b16 %v794, %v790
    %v1059 = vpack.c.b16 %v795, %v791
    %v1060 = vpack.c.b16 %v796, %v792
    %v1061 = vpack.c.b16 %v801, %v797
    %v1062 = vpack.c.b16 %v802, %v798
    %v1063 = vpack.c.b16 %v803, %v799
    %v1064 = vpack.c.b16 %v804, %v800
    %v1065 = vpack.c.b16 %v809, %v805
    %v1066 = vpack.c.b16 %v810, %v806
    %v1067 = vpack.c.b16 %v811, %v807
    %v1068 = vpack.c.b16 %v812, %v808
    %v1069 = vpack.c.b16 %v817, %v813
    %v1070 = vpack.c.b16 %v818, %v814
    %v1071 = vpack.c.b16 %v819, %v815
    %v1072 = vpack.c.b16 %v820, %v816
    %v1073 = vpack.c.b16 %v825, %v821
    %v1074 = vpack.c.b16 %v826, %v822
    %v1075 = vpack.c.b16 %v827, %v823
    %v1076 = vpack.c.b16 %v828, %v824
    %v1077 = vpack.c.b16 %v833, %v829
    %v1078 = vpack.c.b16 %v834, %v830
    %v1079 = vpack.c.b16 %v835, %v831
    %v1080 = vpack.c.b16 %v836, %v832
    %v1081 = vpack.c.b16 %v841, %v837
    %v1082 = vpack.c.b16 %v842, %v838
    %v1083 = vpack.c.b16 %v843, %v839
    %v1084 = vpack.c.b16 %v844, %v840
    %v1085 = vpack.c.b16 %v849, %v845
    %v1086 = vpack.c.b16 %v850, %v846
    %v1087 = vpack.c.b16 %v851, %v847
    %v1088 = vpack.c.b16 %v852, %v848
    %v1089 = vpack.c.b16 %v857, %v853
    %v1090 = vpack.c.b16 %v858, %v854
    %v1091 = vpack.c.b16 %v859, %v855
    %v1092 = vpack.c.b16 %v860, %v856
    %v1093 = vpack.c.b16 %v865, %v861
    %v1094 = vpack.c.b16 %v866, %v862
    %v1095 = vpack.c.b16 %v867, %v863
    %v1096 = vpack.c.b16 %v868, %v864
    %v1097 = vpack.c.b16 %v873, %v869
    %v1098 = vpack.c.b16 %v874, %v870
    %v1099 = vpack.c.b16 %v875, %v871
    %v1100 = vpack.c.b16 %v876, %v872
    %v1101 = vpack.c.b16 %v881, %v877
    %v1102 = vpack.c.b16 %v882, %v878
    %v1103 = vpack.c.b16 %v883, %v879
    %v1104 = vpack.c.b16 %v884, %v880
    %v1105 = vpack.c.b16 %v889, %v885
    %v1106 = vpack.c.b16 %v890, %v886
    %v1107 = vpack.c.b16 %v891, %v887
    %v1108 = vpack.c.b16 %v892, %v888
    %v1109 = vpack.c.b16 %v897, %v893
    %v1110 = vpack.c.b16 %v898, %v894
    %v1111 = vpack.c.b16 %v899, %v895
    %v1112 = vpack.c.b16 %v900, %v896
    %v1113 = vpack.c.b16 %v905, %v901
    %v1114 = vpack.c.b16 %v906, %v902
    %v1115 = vpack.c.b16 %v907, %v903
    %v1116 = vpack.c.b16 %v908, %v904
    %v1117 = vpack.c.b16 %v913, %v909
    %v1118 = vpack.c.b16 %v914, %v910
    %v1119 = vpack.c.b16 %v915, %v911
    %v1120 = vpack.c.b16 %v916, %v912
    %v1121 = vpack.c.b16 %v921, %v917
    %v1122 = vpack.c.b16 %v922, %v918
    %v1123 = vpack.c.b16 %v923, %v919
    %v1124 = vpack.c.b16 %v924, %v920
    %v1125 = vpack.c.b16 %v929, %v925
    %v1126 = vpack.c.b16 %v930, %v926
    %v1127 = vpack.c.b16 %v931, %v927
    %v1128 = vpack.c.b16 %v932, %v928
    %vm1325 = vcmask 130048
    %v1327 = vsel %vm1325, %v338, 0
    %1329 = vmatpush.bf16.msra.mxu0 %v961
    %1330 = vmatpush.bf16.msra.mxu0 %v957
    %1331 = vmatpush.bf16.msra.mxu0 %v953
    %1332 = vmatpush.bf16.msra.mxu0 %v949
    %1333 = vmatpush.bf16.msra.mxu0 %v945
    %1334 = vmatpush.bf16.msra.mxu0 %v941
    %1335 = vmatpush.bf16.msra.mxu0 %v937
    %1336 = vmatpush.bf16.msra.mxu0 %v933
    %1337 = vmatmul.bf16.gmra.mxu0 %v332
    %v1338 = vpop.f32.mrf.mxu0
    %v1339 = vadd.f32 %v302, %v1338
    %v1340 = vpop.f32.mrf.mxu0
    %v1341 = vadd.f32 %v302, %v1340
    %1342 = vdwg.mxu0
    %1343 = vmatpush.bf16.msra.mxu0 %v993
    %1344 = vmatpush.bf16.msra.mxu0 %v989
    %1345 = vmatpush.bf16.msra.mxu0 %v985
    %1346 = vmatpush.bf16.msra.mxu0 %v981
    %1347 = vmatpush.bf16.msra.mxu0 %v977
    %1348 = vmatpush.bf16.msra.mxu0 %v973
    %1349 = vmatpush.bf16.msra.mxu0 %v969
    %1350 = vmatpush.bf16.msra.mxu0 %v965
    %1351 = vmatmul.bf16.gmra.mxu0 %v333
    %v1352 = vpop.f32.mrf.mxu0
    %v1353 = vadd.f32 %v1339, %v1352
    %v1354 = vpop.f32.mrf.mxu0
    %v1355 = vadd.f32 %v1341, %v1354
    %1356 = vdwg.mxu0
    %1357 = vmatpush.bf16.msra.mxu0 %v1025
    %1358 = vmatpush.bf16.msra.mxu0 %v1021
    %1359 = vmatpush.bf16.msra.mxu0 %v1017
    %1360 = vmatpush.bf16.msra.mxu0 %v1013
    %1361 = vmatpush.bf16.msra.mxu0 %v1009
    %1362 = vmatpush.bf16.msra.mxu0 %v1005
    %1363 = vmatpush.bf16.msra.mxu0 %v1001
    %1364 = vmatpush.bf16.msra.mxu0 %v997
    %1365 = vmatmul.bf16.gmra.mxu0 %v334
    %v1366 = vpop.f32.mrf.mxu0
    %v1367 = vadd.f32 %v1353, %v1366
    %v1368 = vpop.f32.mrf.mxu0
    %v1369 = vadd.f32 %v1355, %v1368
    %1370 = vdwg.mxu0
    %1371 = vmatpush.bf16.msra.mxu0 %v1057
    %1372 = vmatpush.bf16.msra.mxu0 %v1053
    %1373 = vmatpush.bf16.msra.mxu0 %v1049
    %1374 = vmatpush.bf16.msra.mxu0 %v1045
    %1375 = vmatpush.bf16.msra.mxu0 %v1041
    %1376 = vmatpush.bf16.msra.mxu0 %v1037
    %1377 = vmatpush.bf16.msra.mxu0 %v1033
    %1378 = vmatpush.bf16.msra.mxu0 %v1029
    %1379 = vmatmul.bf16.gmra.mxu0 %v335
    %v1380 = vpop.f32.mrf.mxu0
    %v1381 = vadd.f32 %v1367, %v1380
    %v1382 = vpop.f32.mrf.mxu0
    %v1383 = vadd.f32 %v1369, %v1382
    %1384 = vdwg.mxu0
    %1385 = vmatpush.bf16.msra.mxu0 %v1089
    %1386 = vmatpush.bf16.msra.mxu0 %v1085
    %1387 = vmatpush.bf16.msra.mxu0 %v1081
    %1388 = vmatpush.bf16.msra.mxu0 %v1077
    %1389 = vmatpush.bf16.msra.mxu0 %v1073
    %1390 = vmatpush.bf16.msra.mxu0 %v1069
    %1391 = vmatpush.bf16.msra.mxu0 %v1065
    %1392 = vmatpush.bf16.msra.mxu0 %v1061
    %1393 = vmatmul.bf16.gmra.mxu0 %v336
    %v1394 = vpop.f32.mrf.mxu0
    %v1395 = vadd.f32 %v1381, %v1394
    %v1396 = vpop.f32.mrf.mxu0
    %v1397 = vadd.f32 %v1383, %v1396
    %1398 = vdwg.mxu0
    %1399 = vmatpush.bf16.msra.mxu0 %v1121
    %1400 = vmatpush.bf16.msra.mxu0 %v1117
    %1401 = vmatpush.bf16.msra.mxu0 %v1113
    %1402 = vmatpush.bf16.msra.mxu0 %v1109
    %1403 = vmatpush.bf16.msra.mxu0 %v1105
    %1404 = vmatpush.bf16.msra.mxu0 %v1101
    %1405 = vmatpush.bf16.msra.mxu0 %v1097
    %1406 = vmatpush.bf16.msra.mxu0 %v1093
    %1407 = vmatmul.bf16.gmra.mxu0 %v337
    %v1408 = vpop.f32.mrf.mxu0
    %v1409 = vadd.f32 %v1395, %v1408
    %v1410 = vpop.f32.mrf.mxu0
    %v1411 = vadd.f32 %v1397, %v1410
    %1412 = vdwg.mxu0
    %1413 = vmatpush.bf16.msra.mxu0 0
    %1414 = vmatpush.bf16.msra.mxu0 0
    %1415 = vmatpush.bf16.msra.mxu0 0
    %1416 = vmatpush.bf16.msra.mxu0 0
    %1417 = vmatpush.bf16.msra.mxu0 0
    %1418 = vmatpush.bf16.msra.mxu0 0
    %1419 = vmatpush.bf16.msra.mxu0 0
    %1420 = vmatpush.bf16.msra.mxu0 %v1125
    %1421 = vmatmul.bf16.gmra.mxu0 %v1327
    %v1422 = vpop.f32.mrf.mxu0
    %v1423 = vadd.f32 %v1409, %v1422
    %v1424 = vpop.f32.mrf.mxu0
    %v1425 = vadd.f32 %v1411, %v1424
    %1426 = vdwg.mxu0
    %1427 = vmatpush.bf16.msra.mxu0 %v962
    %1428 = vmatpush.bf16.msra.mxu0 %v958
    %1429 = vmatpush.bf16.msra.mxu0 %v954
    %1430 = vmatpush.bf16.msra.mxu0 %v950
    %1431 = vmatpush.bf16.msra.mxu0 %v946
    %1432 = vmatpush.bf16.msra.mxu0 %v942
    %1433 = vmatpush.bf16.msra.mxu0 %v938
    %1434 = vmatpush.bf16.msra.mxu0 %v934
    %1435 = vmatmul.bf16.gmra.mxu0 %v332
    %v1436 = vpop.f32.mrf.mxu0
    %v1437 = vadd.f32 %v303, %v1436
    %v1438 = vpop.f32.mrf.mxu0
    %v1439 = vadd.f32 %v303, %v1438
    %1440 = vdwg.mxu0
    %1441 = vmatpush.bf16.msra.mxu0 %v994
    %1442 = vmatpush.bf16.msra.mxu0 %v990
    %1443 = vmatpush.bf16.msra.mxu0 %v986
    %1444 = vmatpush.bf16.msra.mxu0 %v982
    %1445 = vmatpush.bf16.msra.mxu0 %v978
    %1446 = vmatpush.bf16.msra.mxu0 %v974
    %1447 = vmatpush.bf16.msra.mxu0 %v970
    %1448 = vmatpush.bf16.msra.mxu0 %v966
    %1449 = vmatmul.bf16.gmra.mxu0 %v333
    %v1450 = vpop.f32.mrf.mxu0
    %v1451 = vadd.f32 %v1437, %v1450
    %v1452 = vpop.f32.mrf.mxu0
    %v1453 = vadd.f32 %v1439, %v1452
    %1454 = vdwg.mxu0
    %1455 = vmatpush.bf16.msra.mxu0 %v1026
    %1456 = vmatpush.bf16.msra.mxu0 %v1022
    %1457 = vmatpush.bf16.msra.mxu0 %v1018
    %1458 = vmatpush.bf16.msra.mxu0 %v1014
    %1459 = vmatpush.bf16.msra.mxu0 %v1010
    %1460 = vmatpush.bf16.msra.mxu0 %v1006
    %1461 = vmatpush.bf16.msra.mxu0 %v1002
    %1462 = vmatpush.bf16.msra.mxu0 %v998
    %1463 = vmatmul.bf16.gmra.mxu0 %v334
    %v1464 = vpop.f32.mrf.mxu0
    %v1465 = vadd.f32 %v1451, %v1464
    %v1466 = vpop.f32.mrf.mxu0
    %v1467 = vadd.f32 %v1453, %v1466
    %1468 = vdwg.mxu0
    %1469 = vmatpush.bf16.msra.mxu0 %v1058
    %1470 = vmatpush.bf16.msra.mxu0 %v1054
    %1471 = vmatpush.bf16.msra.mxu0 %v1050
    %1472 = vmatpush.bf16.msra.mxu0 %v1046
    %1473 = vmatpush.bf16.msra.mxu0 %v1042
    %1474 = vmatpush.bf16.msra.mxu0 %v1038
    %1475 = vmatpush.bf16.msra.mxu0 %v1034
    %1476 = vmatpush.bf16.msra.mxu0 %v1030
    %1477 = vmatmul.bf16.gmra.mxu0 %v335
    %v1478 = vpop.f32.mrf.mxu0
    %v1479 = vadd.f32 %v1465, %v1478
    %v1480 = vpop.f32.mrf.mxu0
    %v1481 = vadd.f32 %v1467, %v1480
    %1482 = vdwg.mxu0
    %1483 = vmatpush.bf16.msra.mxu0 %v1090
    %1484 = vmatpush.bf16.msra.mxu0 %v1086
    %1485 = vmatpush.bf16.msra.mxu0 %v1082
    %1486 = vmatpush.bf16.msra.mxu0 %v1078
    %1487 = vmatpush.bf16.msra.mxu0 %v1074
    %1488 = vmatpush.bf16.msra.mxu0 %v1070
    %1489 = vmatpush.bf16.msra.mxu0 %v1066
    %1490 = vmatpush.bf16.msra.mxu0 %v1062
    %1491 = vmatmul.bf16.gmra.mxu0 %v336
    %v1492 = vpop.f32.mrf.mxu0
    %v1493 = vadd.f32 %v1479, %v1492
    %v1494 = vpop.f32.mrf.mxu0
    %v1495 = vadd.f32 %v1481, %v1494
    %1496 = vdwg.mxu0
    %1497 = vmatpush.bf16.msra.mxu0 %v1122
    %1498 = vmatpush.bf16.msra.mxu0 %v1118
    %1499 = vmatpush.bf16.msra.mxu0 %v1114
    %1500 = vmatpush.bf16.msra.mxu0 %v1110
    %1501 = vmatpush.bf16.msra.mxu0 %v1106
    %1502 = vmatpush.bf16.msra.mxu0 %v1102
    %1503 = vmatpush.bf16.msra.mxu0 %v1098
    %1504 = vmatpush.bf16.msra.mxu0 %v1094
    %1505 = vmatmul.bf16.gmra.mxu0 %v337
    %v1506 = vpop.f32.mrf.mxu0
    %v1507 = vadd.f32 %v1493, %v1506
    %v1508 = vpop.f32.mrf.mxu0
    %v1509 = vadd.f32 %v1495, %v1508
    %1510 = vdwg.mxu0
    %1511 = vmatpush.bf16.msra.mxu0 0
    %1512 = vmatpush.bf16.msra.mxu0 0
    %1513 = vmatpush.bf16.msra.mxu0 0
    %1514 = vmatpush.bf16.msra.mxu0 0
    %1515 = vmatpush.bf16.msra.mxu0 0
    %1516 = vmatpush.bf16.msra.mxu0 0
    %1517 = vmatpush.bf16.msra.mxu0 0
    %1518 = vmatpush.bf16.msra.mxu0 %v1126
    %1519 = vmatmul.bf16.gmra.mxu0 %v1327
    %v1520 = vpop.f32.mrf.mxu0
    %v1521 = vadd.f32 %v1507, %v1520
    %v1522 = vpop.f32.mrf.mxu0
    %v1523 = vadd.f32 %v1509, %v1522
    %1524 = vdwg.mxu0
    %1525 = vmatpush.bf16.msra.mxu0 %v963
    %1526 = vmatpush.bf16.msra.mxu0 %v959
    %1527 = vmatpush.bf16.msra.mxu0 %v955
    %1528 = vmatpush.bf16.msra.mxu0 %v951
    %1529 = vmatpush.bf16.msra.mxu0 %v947
    %1530 = vmatpush.bf16.msra.mxu0 %v943
    %1531 = vmatpush.bf16.msra.mxu0 %v939
    %1532 = vmatpush.bf16.msra.mxu0 %v935
    %1533 = vmatmul.bf16.gmra.mxu0 %v332
    %v1534 = vpop.f32.mrf.mxu0
    %v1535 = vadd.f32 %v304, %v1534
    %v1536 = vpop.f32.mrf.mxu0
    %v1537 = vadd.f32 %v304, %v1536
    %1538 = vdwg.mxu0
    %1539 = vmatpush.bf16.msra.mxu0 %v995
    %1540 = vmatpush.bf16.msra.mxu0 %v991
    %1541 = vmatpush.bf16.msra.mxu0 %v987
    %1542 = vmatpush.bf16.msra.mxu0 %v983
    %1543 = vmatpush.bf16.msra.mxu0 %v979
    %1544 = vmatpush.bf16.msra.mxu0 %v975
    %1545 = vmatpush.bf16.msra.mxu0 %v971
    %1546 = vmatpush.bf16.msra.mxu0 %v967
    %1547 = vmatmul.bf16.gmra.mxu0 %v333
    %v1548 = vpop.f32.mrf.mxu0
    %v1549 = vadd.f32 %v1535, %v1548
    %v1550 = vpop.f32.mrf.mxu0
    %v1551 = vadd.f32 %v1537, %v1550
    %1552 = vdwg.mxu0
    %1553 = vmatpush.bf16.msra.mxu0 %v1027
    %1554 = vmatpush.bf16.msra.mxu0 %v1023
    %1555 = vmatpush.bf16.msra.mxu0 %v1019
    %1556 = vmatpush.bf16.msra.mxu0 %v1015
    %1557 = vmatpush.bf16.msra.mxu0 %v1011
    %1558 = vmatpush.bf16.msra.mxu0 %v1007
    %1559 = vmatpush.bf16.msra.mxu0 %v1003
    %1560 = vmatpush.bf16.msra.mxu0 %v999
    %1561 = vmatmul.bf16.gmra.mxu0 %v334
    %v1562 = vpop.f32.mrf.mxu0
    %v1563 = vadd.f32 %v1549, %v1562
    %v1564 = vpop.f32.mrf.mxu0
    %v1565 = vadd.f32 %v1551, %v1564
    %1566 = vdwg.mxu0
    %1567 = vmatpush.bf16.msra.mxu0 %v1059
    %1568 = vmatpush.bf16.msra.mxu0 %v1055
    %1569 = vmatpush.bf16.msra.mxu0 %v1051
    %1570 = vmatpush.bf16.msra.mxu0 %v1047
    %1571 = vmatpush.bf16.msra.mxu0 %v1043
    %1572 = vmatpush.bf16.msra.mxu0 %v1039
    %1573 = vmatpush.bf16.msra.mxu0 %v1035
    %1574 = vmatpush.bf16.msra.mxu0 %v1031
    %1575 = vmatmul.bf16.gmra.mxu0 %v335
    %v1576 = vpop.f32.mrf.mxu0
    %v1577 = vadd.f32 %v1563, %v1576
    %v1578 = vpop.f32.mrf.mxu0
    %v1579 = vadd.f32 %v1565, %v1578
    %1580 = vdwg.mxu0
    %1581 = vmatpush.bf16.msra.mxu0 %v1091
    %1582 = vmatpush.bf16.msra.mxu0 %v1087
    %1583 = vmatpush.bf16.msra.mxu0 %v1083
    %1584 = vmatpush.bf16.msra.mxu0 %v1079
    %1585 = vmatpush.bf16.msra.mxu0 %v1075
    %1586 = vmatpush.bf16.msra.mxu0 %v1071
    %1587 = vmatpush.bf16.msra.mxu0 %v1067
    %1588 = vmatpush.bf16.msra.mxu0 %v1063
    %1589 = vmatmul.bf16.gmra.mxu0 %v336
    %v1590 = vpop.f32.mrf.mxu0
    %v1591 = vadd.f32 %v1577, %v1590
    %v1592 = vpop.f32.mrf.mxu0
    %v1593 = vadd.f32 %v1579, %v1592
    %1594 = vdwg.mxu0
    %1595 = vmatpush.bf16.msra.mxu0 %v1123
    %1596 = vmatpush.bf16.msra.mxu0 %v1119
    %1597 = vmatpush.bf16.msra.mxu0 %v1115
    %1598 = vmatpush.bf16.msra.mxu0 %v1111
    %1599 = vmatpush.bf16.msra.mxu0 %v1107
    %1600 = vmatpush.bf16.msra.mxu0 %v1103
    %1601 = vmatpush.bf16.msra.mxu0 %v1099
    %1602 = vmatpush.bf16.msra.mxu0 %v1095
    %1603 = vmatmul.bf16.gmra.mxu0 %v337
    %v1604 = vpop.f32.mrf.mxu0
    %v1605 = vadd.f32 %v1591, %v1604
    %v1606 = vpop.f32.mrf.mxu0
    %v1607 = vadd.f32 %v1593, %v1606
    %1608 = vdwg.mxu0
    %1609 = vmatpush.bf16.msra.mxu0 0
    %1610 = vmatpush.bf16.msra.mxu0 0
    %1611 = vmatpush.bf16.msra.mxu0 0
    %1612 = vmatpush.bf16.msra.mxu0 0
    %1613 = vmatpush.bf16.msra.mxu0 0
    %1614 = vmatpush.bf16.msra.mxu0 0
    %1615 = vmatpush.bf16.msra.mxu0 0
    %1616 = vmatpush.bf16.msra.mxu0 %v1127
    %1617 = vmatmul.bf16.gmra.mxu0 %v1327
    %v1618 = vpop.f32.mrf.mxu0
    %v1619 = vadd.f32 %v1605, %v1618
    %v1620 = vpop.f32.mrf.mxu0
    %v1621 = vadd.f32 %v1607, %v1620
    %1622 = vdwg.mxu0
    %1623 = vmatpush.bf16.msra.mxu0 %v964
    %1624 = vmatpush.bf16.msra.mxu0 %v960
    %1625 = vmatpush.bf16.msra.mxu0 %v956
    %1626 = vmatpush.bf16.msra.mxu0 %v952
    %1627 = vmatpush.bf16.msra.mxu0 %v948
    %1628 = vmatpush.bf16.msra.mxu0 %v944
    %1629 = vmatpush.bf16.msra.mxu0 %v940
    %1630 = vmatpush.bf16.msra.mxu0 %v936
    %1631 = vmatmul.bf16.gmra.mxu0 %v332
    %v1632 = vpop.f32.mrf.mxu0
    %v1633 = vadd.f32 %v305, %v1632
    %v1634 = vpop.f32.mrf.mxu0
    %v1635 = vadd.f32 %v305, %v1634
    %1636 = vdwg.mxu0
    %1637 = vmatpush.bf16.msra.mxu0 %v996
    %1638 = vmatpush.bf16.msra.mxu0 %v992
    %1639 = vmatpush.bf16.msra.mxu0 %v988
    %1640 = vmatpush.bf16.msra.mxu0 %v984
    %1641 = vmatpush.bf16.msra.mxu0 %v980
    %1642 = vmatpush.bf16.msra.mxu0 %v976
    %1643 = vmatpush.bf16.msra.mxu0 %v972
    %1644 = vmatpush.bf16.msra.mxu0 %v968
    %1645 = vmatmul.bf16.gmra.mxu0 %v333
    %v1646 = vpop.f32.mrf.mxu0
    %v1647 = vadd.f32 %v1633, %v1646
    %v1648 = vpop.f32.mrf.mxu0
    %v1649 = vadd.f32 %v1635, %v1648
    %1650 = vdwg.mxu0
    %1651 = vmatpush.bf16.msra.mxu0 %v1028
    %1652 = vmatpush.bf16.msra.mxu0 %v1024
    %1653 = vmatpush.bf16.msra.mxu0 %v1020
    %1654 = vmatpush.bf16.msra.mxu0 %v1016
    %1655 = vmatpush.bf16.msra.mxu0 %v1012
    %1656 = vmatpush.bf16.msra.mxu0 %v1008
    %1657 = vmatpush.bf16.msra.mxu0 %v1004
    %1658 = vmatpush.bf16.msra.mxu0 %v1000
    %1659 = vmatmul.bf16.gmra.mxu0 %v334
    %v1660 = vpop.f32.mrf.mxu0
    %v1661 = vadd.f32 %v1647, %v1660
    %v1662 = vpop.f32.mrf.mxu0
    %v1663 = vadd.f32 %v1649, %v1662
    %1664 = vdwg.mxu0
    %1665 = vmatpush.bf16.msra.mxu0 %v1060
    %1666 = vmatpush.bf16.msra.mxu0 %v1056
    %1667 = vmatpush.bf16.msra.mxu0 %v1052
    %1668 = vmatpush.bf16.msra.mxu0 %v1048
    %1669 = vmatpush.bf16.msra.mxu0 %v1044
    %1670 = vmatpush.bf16.msra.mxu0 %v1040
    %1671 = vmatpush.bf16.msra.mxu0 %v1036
    %1672 = vmatpush.bf16.msra.mxu0 %v1032
    %1673 = vmatmul.bf16.gmra.mxu0 %v335
    %v1674 = vpop.f32.mrf.mxu0
    %v1675 = vadd.f32 %v1661, %v1674
    %v1676 = vpop.f32.mrf.mxu0
    %v1677 = vadd.f32 %v1663, %v1676
    %1678 = vdwg.mxu0
    %1679 = vmatpush.bf16.msra.mxu0 %v1092
    %1680 = vmatpush.bf16.msra.mxu0 %v1088
    %1681 = vmatpush.bf16.msra.mxu0 %v1084
    %1682 = vmatpush.bf16.msra.mxu0 %v1080
    %1683 = vmatpush.bf16.msra.mxu0 %v1076
    %1684 = vmatpush.bf16.msra.mxu0 %v1072
    %1685 = vmatpush.bf16.msra.mxu0 %v1068
    %1686 = vmatpush.bf16.msra.mxu0 %v1064
    %1687 = vmatmul.bf16.gmra.mxu0 %v336
    %v1688 = vpop.f32.mrf.mxu0
    %v1689 = vadd.f32 %v1675, %v1688
    %v1690 = vpop.f32.mrf.mxu0
    %v1691 = vadd.f32 %v1677, %v1690
    %1692 = vdwg.mxu0
    %1693 = vmatpush.bf16.msra.mxu0 %v1124
    %1694 = vmatpush.bf16.msra.mxu0 %v1120
    %1695 = vmatpush.bf16.msra.mxu0 %v1116
    %1696 = vmatpush.bf16.msra.mxu0 %v1112
    %1697 = vmatpush.bf16.msra.mxu0 %v1108
    %1698 = vmatpush.bf16.msra.mxu0 %v1104
    %1699 = vmatpush.bf16.msra.mxu0 %v1100
    %1700 = vmatpush.bf16.msra.mxu0 %v1096
    %1701 = vmatmul.bf16.gmra.mxu0 %v337
    %v1702 = vpop.f32.mrf.mxu0
    %v1703 = vadd.f32 %v1689, %v1702
    %v1704 = vpop.f32.mrf.mxu0
    %v1705 = vadd.f32 %v1691, %v1704
    %1706 = vdwg.mxu0
    %1707 = vmatpush.bf16.msra.mxu0 0
    %1708 = vmatpush.bf16.msra.mxu0 0
    %1709 = vmatpush.bf16.msra.mxu0 0
    %1710 = vmatpush.bf16.msra.mxu0 0
    %1711 = vmatpush.bf16.msra.mxu0 0
    %1712 = vmatpush.bf16.msra.mxu0 0
    %1713 = vmatpush.bf16.msra.mxu0 0
    %1714 = vmatpush.bf16.msra.mxu0 %v1128
    %1715 = vmatmul.bf16.gmra.mxu0 %v1327
    %v1716 = vpop.f32.mrf.mxu0
    %v1717 = vadd.f32 %v1703, %v1716
    %v1718 = vpop.f32.mrf.mxu0
    %v1719 = vadd.f32 %v1705, %v1718
    %1720 = vdwg.mxu0
    %v1721 = vmax.f32 %v1423, 0.0
    %v1722 = vmax.f32 %v1521, 0.0
    %v1723 = vmax.f32 %v1619, 0.0
    %v1724 = vmax.f32 %v1717, 0.0
    %v1725 = vmax.f32 %v1425, 0.0
    %v1726 = vmax.f32 %v1523, 0.0
    %v1727 = vmax.f32 %v1621, 0.0
    %v1728 = vmax.f32 %v1719, 0.0
    %v1729 = vpack.c.bf16 %v1725, %v1721
    %v1730 = vpack.c.bf16 %v1726, %v1722
    %v1731 = vpack.c.bf16 %v1727, %v1723
    %v1732 = vpack.c.bf16 %v1728, %v1724
    %v1733 = vld [vmem:[#allocation8] sm:$0xff]
    %v1734 = vld [vmem:[#allocation8 + $0x8] sm:$0xff]
    %v1735 = vld [vmem:[#allocation8 + $0x10] sm:$0xf]
    %v1736 = vld [vmem:[#allocation8 + $0x14] sm:$0xff]
    %v1737 = vld [vmem:[#allocation8 + $0x1c] sm:$0xff]
    %v1738 = vld [vmem:[#allocation8 + $0x24] sm:$0xf]
    %v1739 = vld [vmem:[#allocation8 + $0x28] sm:$0xff]
    %v1740 = vld [vmem:[#allocation8 + $0x30] sm:$0xff]
    %v1741 = vld [vmem:[#allocation8 + $0x38] sm:$0xf]
    %v1742 = vld [vmem:[#allocation8 + $0x3c] sm:$0xff]
    %v1743 = vld [vmem:[#allocation8 + $0x44] sm:$0xff]
    %v1744 = vld [vmem:[#allocation8 + $0x4c] sm:$0xf]
    %v1745 = vld [vmem:[#allocation8 + $0x50] sm:$0xff]
    %v1746 = vld [vmem:[#allocation8 + $0x58] sm:$0xff]
    %v1747 = vld [vmem:[#allocation8 + $0x60] sm:$0xf]
    %v1748 = vld [vmem:[#allocation8 + $0x64] sm:$0xff]
    %v1749 = vld [vmem:[#allocation8 + $0x6c] sm:$0xff]
    %v1750 = vld [vmem:[#allocation8 + $0x74] sm:$0xf]
    %v1751 = vld [vmem:[#allocation8 + $0x78] sm:$0xff]
    %v1752 = vld [vmem:[#allocation8 + $0x80] sm:$0xff]
    %v1753 = vld [vmem:[#allocation8 + $0x88] sm:$0xf]
    %v1754 = vld [vmem:[#allocation8 + $0x8c] sm:$0xff]
    %v1755 = vld [vmem:[#allocation8 + $0x94] sm:$0xff]
    %v1756 = vld [vmem:[#allocation8 + $0x9c] sm:$0xf]
    %v1757 = vld [vmem:[#allocation8 + $0xa0] sm:$0xff]
    %v1758 = vld [vmem:[#allocation8 + $0xa8] sm:$0xff]
    %v1759 = vld [vmem:[#allocation8 + $0xb0] sm:$0xf]
    %v1760 = vld [vmem:[#allocation8 + $0xb4] sm:$0xff]
    %v1761 = vld [vmem:[#allocation8 + $0xbc] sm:$0xff]
    %v1762 = vld [vmem:[#allocation8 + $0xc4] sm:$0xf]
    %v1763 = vld [vmem:[#allocation8 + $0xc8] sm:$0xff]
    %v1764 = vld [vmem:[#allocation8 + $0xd0] sm:$0xff]
    %v1765 = vld [vmem:[#allocation8 + $0xd8] sm:$0xf]
    %v1766 = vld [vmem:[#allocation8 + $0xdc] sm:$0xff]
    %v1767 = vld [vmem:[#allocation8 + $0xe4] sm:$0xff]
    %v1768 = vld [vmem:[#allocation8 + $0xec] sm:$0xf]
    %v1769 = vld [vmem:[#allocation8 + $0xf0] sm:$0xff]
    %v1770 = vld [vmem:[#allocation8 + $0xf8] sm:$0xff]
    %v1771 = vld [vmem:[#allocation8 + $0x100] sm:$0xf]
    %v1772 = vld [vmem:[#allocation8 + $0x104] sm:$0xff]
    %v1773 = vld [vmem:[#allocation8 + $0x10c] sm:$0xff]
    %v1774 = vld [vmem:[#allocation8 + $0x114] sm:$0xf]
    %v1775 = vld [vmem:[#allocation8 + $0x118] sm:$0xff]
    %v1776 = vld [vmem:[#allocation8 + $0x120] sm:$0xff]
    %v1777 = vld [vmem:[#allocation8 + $0x128] sm:$0xf]
    %v1778 = vld [vmem:[#allocation8 + $0x12c] sm:$0xff]
    %v1779 = vld [vmem:[#allocation8 + $0x134] sm:$0xff]
    %v1780 = vld [vmem:[#allocation8 + $0x13c] sm:$0xf]
    %v1781 = vld [vmem:[#allocation8 + $0x140] sm:$0xff]
    %v1782 = vld [vmem:[#allocation8 + $0x148] sm:$0xff]
    %v1783 = vld [vmem:[#allocation8 + $0x150] sm:$0xf]
    %v1784 = vld [vmem:[#allocation8 + $0x154] sm:$0xff]
    %v1785 = vld [vmem:[#allocation8 + $0x15c] sm:$0xff]
    %v1786 = vld [vmem:[#allocation8 + $0x164] sm:$0xf]
    %v1787 = vld [vmem:[#allocation8 + $0x168] sm:$0xff]
    %v1788 = vld [vmem:[#allocation8 + $0x170] sm:$0xff]
    %v1789 = vld [vmem:[#allocation8 + $0x178] sm:$0xf]
    %v1790 = vld [vmem:[#allocation8 + $0x17c] sm:$0xff]
    %v1791 = vld [vmem:[#allocation8 + $0x184] sm:$0xff]
    %v1792 = vld [vmem:[#allocation8 + $0x18c] sm:$0xf]
    %v1793 = vld [vmem:[#allocation8 + $0x190] sm:$0xff]
    %v1794 = vld [vmem:[#allocation8 + $0x198] sm:$0xff]
    %v1795 = vld [vmem:[#allocation8 + $0x1a0] sm:$0xf]
    %v1796 = vld [vmem:[#allocation8 + $0x1a4] sm:$0xff]
    %v1797 = vld [vmem:[#allocation8 + $0x1ac] sm:$0xff]
    %v1798 = vld [vmem:[#allocation8 + $0x1b4] sm:$0xf]
    %v1799 = vld [vmem:[#allocation8 + $0x1b8] sm:$0xff]
    %v1800 = vld [vmem:[#allocation8 + $0x1c0] sm:$0xff]
    %v1801 = vld [vmem:[#allocation8 + $0x1c8] sm:$0xf]
    %v1802 = vld [vmem:[#allocation8 + $0x1cc] sm:$0xff]
    %v1803 = vld [vmem:[#allocation8 + $0x1d4] sm:$0xff]
    %v1804 = vld [vmem:[#allocation8 + $0x1dc] sm:$0xf]
    %v1805 = vld [vmem:[#allocation8 + $0x1e0] sm:$0xff]
    %v1806 = vld [vmem:[#allocation8 + $0x1e8] sm:$0xff]
    %v1807 = vld [vmem:[#allocation8 + $0x1f0] sm:$0xf]
    %v1808 = vld [vmem:[#allocation8 + $0x1f4] sm:$0xff]
    %v1809 = vld [vmem:[#allocation8 + $0x1fc] sm:$0xff]
    %v1810 = vld [vmem:[#allocation8 + $0x204] sm:$0xf]
    %v1811 = vld [vmem:[#allocation8 + $0x208] sm:$0xff]
    %v1812 = vld [vmem:[#allocation8 + $0x210] sm:$0xff]
    %v1813 = vld [vmem:[#allocation8 + $0x218] sm:$0xf]
    %v1814 = vld [vmem:[#allocation8 + $0x21c] sm:$0xff]
    %v1815 = vld [vmem:[#allocation8 + $0x224] sm:$0xff]
    %v1816 = vld [vmem:[#allocation8 + $0x22c] sm:$0xf]
    %v1817 = vld [vmem:[#allocation8 + $0x230] sm:$0xff]
    %v1818 = vld [vmem:[#allocation8 + $0x238] sm:$0xff]
    %v1819 = vld [vmem:[#allocation8 + $0x240] sm:$0xf]
    %v1820 = vld [vmem:[#allocation8 + $0x244] sm:$0xff]
    %v1821 = vld [vmem:[#allocation8 + $0x24c] sm:$0xff]
    %v1822 = vld [vmem:[#allocation8 + $0x254] sm:$0xf]
    %v1823 = vld [vmem:[#allocation8 + $0x258] sm:$0xff]
    %v1824 = vld [vmem:[#allocation8 + $0x260] sm:$0xff]
    %v1825 = vld [vmem:[#allocation8 + $0x268] sm:$0xf]
    %v1826 = vld [vmem:[#allocation8 + $0x26c] sm:$0xff]
    %v1827 = vld [vmem:[#allocation8 + $0x274] sm:$0xff]
    %v1828 = vld [vmem:[#allocation8 + $0x27c] sm:$0xf]
    %v1829 = vld [vmem:[#allocation8 + $0x280] sm:$0xff]
    %v1830 = vld [vmem:[#allocation8 + $0x288] sm:$0xff]
    %v1831 = vld [vmem:[#allocation8 + $0x290] sm:$0xf]
    %v1832 = vld [vmem:[#allocation8 + $0x294] sm:$0xff]
    %v1833 = vld [vmem:[#allocation8 + $0x29c] sm:$0xff]
    %v1834 = vld [vmem:[#allocation8 + $0x2a4] sm:$0xf]
    %v1835 = vld [vmem:[#allocation8 + $0x2a8] sm:$0xff]
    %v1836 = vld [vmem:[#allocation8 + $0x2b0] sm:$0xff]
    %v1837 = vld [vmem:[#allocation8 + $0x2b8] sm:$0xf]
    %v1838 = vld [vmem:[#allocation8 + $0x2bc] sm:$0xff]
    %v1839 = vld [vmem:[#allocation8 + $0x2c4] sm:$0xff]
    %v1840 = vld [vmem:[#allocation8 + $0x2cc] sm:$0xf]
    %v1841 = vld [vmem:[#allocation8 + $0x2d0] sm:$0xff]
    %v1842 = vld [vmem:[#allocation8 + $0x2d8] sm:$0xff]
    %v1843 = vld [vmem:[#allocation8 + $0x2e0] sm:$0xf]
    %v1844 = vld [vmem:[#allocation8 + $0x2e4] sm:$0xff]
    %v1845 = vld [vmem:[#allocation8 + $0x2ec] sm:$0xff]
    %v1846 = vld [vmem:[#allocation8 + $0x2f4] sm:$0xf]
    %v1847 = vld [vmem:[#allocation8 + $0x2f8] sm:$0xff]
    %v1848 = vld [vmem:[#allocation8 + $0x300] sm:$0xff]
    %v1849 = vld [vmem:[#allocation8 + $0x308] sm:$0xf]
    %v1850 = vld [vmem:[#allocation8 + $0x30c] sm:$0xff]
    %v1851 = vld [vmem:[#allocation8 + $0x314] sm:$0xff]
    %v1852 = vld [vmem:[#allocation8 + $0x31c] sm:$0xf]
    %v1853 = vld [vmem:[#allocation8 + $0x320] sm:$0xff]
    %v1854 = vld [vmem:[#allocation8 + $0x328] sm:$0xff]
    %v1855 = vld [vmem:[#allocation8 + $0x330] sm:$0xf]
    %v1856 = vld [vmem:[#allocation8 + $0x334] sm:$0xff]
    %v1857 = vld [vmem:[#allocation8 + $0x33c] sm:$0xff]
    %v1858 = vld [vmem:[#allocation8 + $0x344] sm:$0xf]
    %v1859 = vld [vmem:[#allocation8 + $0x348] sm:$0xff]
    %v1860 = vld [vmem:[#allocation8 + $0x350] sm:$0xff]
    %v1861 = vld [vmem:[#allocation8 + $0x358] sm:$0xf]
    %v1862 = vld [vmem:[#allocation8 + $0x35c] sm:$0xff]
    %v1863 = vld [vmem:[#allocation8 + $0x364] sm:$0xff]
    %v1864 = vld [vmem:[#allocation8 + $0x36c] sm:$0xf]
    %v1865 = vld [vmem:[#allocation8 + $0x370] sm:$0xff]
    %v1866 = vld [vmem:[#allocation8 + $0x378] sm:$0xff]
    %v1867 = vld [vmem:[#allocation8 + $0x380] sm:$0xf]
    %v1868 = vld [vmem:[#allocation8 + $0x384] sm:$0xff]
    %v1869 = vld [vmem:[#allocation8 + $0x38c] sm:$0xff]
    %v1870 = vld [vmem:[#allocation8 + $0x394] sm:$0xf]
    %v1871 = vld [vmem:[#allocation8 + $0x398] sm:$0xff]
    %v1872 = vld [vmem:[#allocation8 + $0x3a0] sm:$0xff]
    %v1873 = vld [vmem:[#allocation8 + $0x3a8] sm:$0xf]
    %v1874 = vld [vmem:[#allocation8 + $0x3ac] sm:$0xff]
    %v1875 = vld [vmem:[#allocation8 + $0x3b4] sm:$0xff]
    %v1876 = vld [vmem:[#allocation8 + $0x3bc] sm:$0xf]
    %v1877 = vld [vmem:[#allocation8 + $0x3c0] sm:$0xff]
    %v1878 = vld [vmem:[#allocation8 + $0x3c8] sm:$0xff]
    %v1879 = vld [vmem:[#allocation8 + $0x3d0] sm:$0xf]
    %v1880 = vld [vmem:[#allocation8 + $0x3d4] sm:$0xff]
    %v1881 = vld [vmem:[#allocation8 + $0x3dc] sm:$0xff]
    %v1882 = vld [vmem:[#allocation8 + $0x3e4] sm:$0xf]
    %v1883 = vld [vmem:[#allocation8 + $0x3e8] sm:$0xff]
    %v1884 = vld [vmem:[#allocation8 + $0x3f0] sm:$0xff]
    %v1885 = vld [vmem:[#allocation8 + $0x3f8] sm:$0xf]
    %v1886 = vld [vmem:[#allocation8 + $0x3fc] sm:$0xff]
    %v1887 = vld [vmem:[#allocation8 + $0x404] sm:$0xff]
    %v1888 = vld [vmem:[#allocation8 + $0x40c] sm:$0xf]
    %v1889 = vld [vmem:[#allocation8 + $0x410] sm:$0xff]
    %v1890 = vld [vmem:[#allocation8 + $0x418] sm:$0xff]
    %v1891 = vld [vmem:[#allocation8 + $0x420] sm:$0xf]
    %v1892 = vld [vmem:[#allocation8 + $0x424] sm:$0xff]
    %v1893 = vld [vmem:[#allocation8 + $0x42c] sm:$0xff]
    %v1894 = vld [vmem:[#allocation8 + $0x434] sm:$0xf]
    %v1895 = vld [vmem:[#allocation8 + $0x438] sm:$0xff]
    %v1896 = vld [vmem:[#allocation8 + $0x440] sm:$0xff]
    %v1897 = vld [vmem:[#allocation8 + $0x448] sm:$0xf]
    %v1898 = vld [vmem:[#allocation8 + $0x44c] sm:$0xff]
    %v1899 = vld [vmem:[#allocation8 + $0x454] sm:$0xff]
    %v1900 = vld [vmem:[#allocation8 + $0x45c] sm:$0xf]
    %v1901 = vld [vmem:[#allocation8 + $0x460] sm:$0xff]
    %v1902 = vld [vmem:[#allocation8 + $0x468] sm:$0xff]
    %v1903 = vld [vmem:[#allocation8 + $0x470] sm:$0xf]
    %v1904 = vld [vmem:[#allocation8 + $0x474] sm:$0xff]
    %v1905 = vld [vmem:[#allocation8 + $0x47c] sm:$0xff]
    %v1906 = vld [vmem:[#allocation8 + $0x484] sm:$0xf]
    %v1907 = vld [vmem:[#allocation8 + $0x488] sm:$0xff]
    %v1908 = vld [vmem:[#allocation8 + $0x490] sm:$0xff]
    %v1909 = vld [vmem:[#allocation8 + $0x498] sm:$0xf]
    %v1910 = vld [vmem:[#allocation8 + $0x49c] sm:$0xff]
    %v1911 = vld [vmem:[#allocation8 + $0x4a4] sm:$0xff]
    %v1912 = vld [vmem:[#allocation8 + $0x4ac] sm:$0xf]
    %v1913 = vld [vmem:[#allocation8 + $0x4b0] sm:$0xff]
    %v1914 = vld [vmem:[#allocation8 + $0x4b8] sm:$0xff]
    %v1915 = vld [vmem:[#allocation8 + $0x4c0] sm:$0xf]
    %v1916 = vld [vmem:[#allocation8 + $0x4c4] sm:$0xff]
    %v1917 = vld [vmem:[#allocation8 + $0x4cc] sm:$0xff]
    %v1918 = vld [vmem:[#allocation8 + $0x4d4] sm:$0xf]
    %v1919 = vld [vmem:[#allocation8 + $0x4d8] sm:$0xff]
    %v1920 = vld [vmem:[#allocation8 + $0x4e0] sm:$0xff]
    %v1921 = vld [vmem:[#allocation8 + $0x4e8] sm:$0xf]
    %v1922 = vld [vmem:[#allocation8 + $0x4ec] sm:$0xff]
    %v1923 = vld [vmem:[#allocation8 + $0x4f4] sm:$0xff]
    %v1924 = vld [vmem:[#allocation8 + $0x4fc] sm:$0xf]
    %v1925 = vld [vmem:[#allocation10] sm:$0x1f]
    %v1927 = vperm.slane %v1925, 0
    %v1928 = vperm.slane %v1925, 1
    %v1929 = vperm.slane %v1925, 2
    %v1930 = vperm.slane %v1925, 3
    %v1931 = vperm.slane %v1925, 4
    %v2129 = vunpack.c.l.b16 %v1733
    %v2130 = vunpack.c.h.b16 %v1733
    %v2131 = vunpack.c.l.b16 %v1734
    %v2132 = vunpack.c.h.b16 %v1734
    %v2133 = vunpack.c.l.b16 %v1735
    %v2134 = vunpack.c.l.b16 %v1736
    %v2135 = vunpack.c.h.b16 %v1736
    %v2136 = vunpack.c.l.b16 %v1737
    %v2137 = vunpack.c.h.b16 %v1737
    %v2138 = vunpack.c.l.b16 %v1738
    %v2139 = vunpack.c.l.b16 %v1739
    %v2140 = vunpack.c.h.b16 %v1739
    %v2141 = vunpack.c.l.b16 %v1740
    %v2142 = vunpack.c.h.b16 %v1740
    %v2143 = vunpack.c.l.b16 %v1741
    %v2144 = vunpack.c.l.b16 %v1742
    %v2145 = vunpack.c.h.b16 %v1742
    %v2146 = vunpack.c.l.b16 %v1743
    %v2147 = vunpack.c.h.b16 %v1743
    %v2148 = vunpack.c.l.b16 %v1744
    %v2149 = vunpack.c.l.b16 %v1745
    %v2150 = vunpack.c.h.b16 %v1745
    %v2151 = vunpack.c.l.b16 %v1746
    %v2152 = vunpack.c.h.b16 %v1746
    %v2153 = vunpack.c.l.b16 %v1747
    %v2154 = vunpack.c.l.b16 %v1748
    %v2155 = vunpack.c.h.b16 %v1748
    %v2156 = vunpack.c.l.b16 %v1749
    %v2157 = vunpack.c.h.b16 %v1749
    %v2158 = vunpack.c.l.b16 %v1750
    %v2159 = vunpack.c.l.b16 %v1751
    %v2160 = vunpack.c.h.b16 %v1751
    %v2161 = vunpack.c.l.b16 %v1752
    %v2162 = vunpack.c.h.b16 %v1752
    %v2163 = vunpack.c.l.b16 %v1753
    %v2164 = vunpack.c.l.b16 %v1754
    %v2165 = vunpack.c.h.b16 %v1754
    %v2166 = vunpack.c.l.b16 %v1755
    %v2167 = vunpack.c.h.b16 %v1755
    %v2168 = vunpack.c.l.b16 %v1756
    %v2169 = vunpack.c.l.b16 %v1757
    %v2170 = vunpack.c.h.b16 %v1757
    %v2171 = vunpack.c.l.b16 %v1758
    %v2172 = vunpack.c.h.b16 %v1758
    %v2173 = vunpack.c.l.b16 %v1759
    %v2174 = vunpack.c.l.b16 %v1760
    %v2175 = vunpack.c.h.b16 %v1760
    %v2176 = vunpack.c.l.b16 %v1761
    %v2177 = vunpack.c.h.b16 %v1761
    %v2178 = vunpack.c.l.b16 %v1762
    %v2179 = vunpack.c.l.b16 %v1763
    %v2180 = vunpack.c.h.b16 %v1763
    %v2181 = vunpack.c.l.b16 %v1764
    %v2182 = vunpack.c.h.b16 %v1764
    %v2183 = vunpack.c.l.b16 %v1765
    %v2184 = vunpack.c.l.b16 %v1766
    %v2185 = vunpack.c.h.b16 %v1766
    %v2186 = vunpack.c.l.b16 %v1767
    %v2187 = vunpack.c.h.b16 %v1767
    %v2188 = vunpack.c.l.b16 %v1768
    %v2189 = vunpack.c.l.b16 %v1769
    %v2190 = vunpack.c.h.b16 %v1769
    %v2191 = vunpack.c.l.b16 %v1770
    %v2192 = vunpack.c.h.b16 %v1770
    %v2193 = vunpack.c.l.b16 %v1771
    %v2194 = vunpack.c.l.b16 %v1772
    %v2195 = vunpack.c.h.b16 %v1772
    %v2196 = vunpack.c.l.b16 %v1773
    %v2197 = vunpack.c.h.b16 %v1773
    %v2198 = vunpack.c.l.b16 %v1774
    %v2199 = vunpack.c.l.b16 %v1775
    %v2200 = vunpack.c.h.b16 %v1775
    %v2201 = vunpack.c.l.b16 %v1776
    %v2202 = vunpack.c.h.b16 %v1776
    %v2203 = vunpack.c.l.b16 %v1777
    %v2204 = vunpack.c.l.b16 %v1778
    %v2205 = vunpack.c.h.b16 %v1778
    %v2206 = vunpack.c.l.b16 %v1779
    %v2207 = vunpack.c.h.b16 %v1779
    %v2208 = vunpack.c.l.b16 %v1780
    %v2209 = vunpack.c.l.b16 %v1781
    %v2210 = vunpack.c.h.b16 %v1781
    %v2211 = vunpack.c.l.b16 %v1782
    %v2212 = vunpack.c.h.b16 %v1782
    %v2213 = vunpack.c.l.b16 %v1783
    %v2214 = vunpack.c.l.b16 %v1784
    %v2215 = vunpack.c.h.b16 %v1784
    %v2216 = vunpack.c.l.b16 %v1785
    %v2217 = vunpack.c.h.b16 %v1785
    %v2218 = vunpack.c.l.b16 %v1786
    %v2219 = vunpack.c.l.b16 %v1787
    %v2220 = vunpack.c.h.b16 %v1787
    %v2221 = vunpack.c.l.b16 %v1788
    %v2222 = vunpack.c.h.b16 %v1788
    %v2223 = vunpack.c.l.b16 %v1789
    %v2224 = vunpack.c.l.b16 %v1790
    %v2225 = vunpack.c.h.b16 %v1790
    %v2226 = vunpack.c.l.b16 %v1791
    %v2227 = vunpack.c.h.b16 %v1791
    %v2228 = vunpack.c.l.b16 %v1792
    %v2229 = vunpack.c.l.b16 %v1793
    %v2230 = vunpack.c.h.b16 %v1793
    %v2231 = vunpack.c.l.b16 %v1794
    %v2232 = vunpack.c.h.b16 %v1794
    %v2233 = vunpack.c.l.b16 %v1795
    %v2234 = vunpack.c.l.b16 %v1796
    %v2235 = vunpack.c.h.b16 %v1796
    %v2236 = vunpack.c.l.b16 %v1797
    %v2237 = vunpack.c.h.b16 %v1797
    %v2238 = vunpack.c.l.b16 %v1798
    %v2239 = vunpack.c.l.b16 %v1799
    %v2240 = vunpack.c.h.b16 %v1799
    %v2241 = vunpack.c.l.b16 %v1800
    %v2242 = vunpack.c.h.b16 %v1800
    %v2243 = vunpack.c.l.b16 %v1801
    %v2244 = vunpack.c.l.b16 %v1802
    %v2245 = vunpack.c.h.b16 %v1802
    %v2246 = vunpack.c.l.b16 %v1803
    %v2247 = vunpack.c.h.b16 %v1803
    %v2248 = vunpack.c.l.b16 %v1804
    %v2249 = vunpack.c.l.b16 %v1805
    %v2250 = vunpack.c.h.b16 %v1805
    %v2251 = vunpack.c.l.b16 %v1806
    %v2252 = vunpack.c.h.b16 %v1806
    %v2253 = vunpack.c.l.b16 %v1807
    %v2254 = vunpack.c.l.b16 %v1808
    %v2255 = vunpack.c.h.b16 %v1808
    %v2256 = vunpack.c.l.b16 %v1809
    %v2257 = vunpack.c.h.b16 %v1809
    %v2258 = vunpack.c.l.b16 %v1810
    %v2259 = vunpack.c.l.b16 %v1811
    %v2260 = vunpack.c.h.b16 %v1811
    %v2261 = vunpack.c.l.b16 %v1812
    %v2262 = vunpack.c.h.b16 %v1812
    %v2263 = vunpack.c.l.b16 %v1813
    %v2264 = vunpack.c.l.b16 %v1814
    %v2265 = vunpack.c.h.b16 %v1814
    %v2266 = vunpack.c.l.b16 %v1815
    %v2267 = vunpack.c.h.b16 %v1815
    %v2268 = vunpack.c.l.b16 %v1816
    %v2269 = vunpack.c.l.b16 %v1817
    %v2270 = vunpack.c.h.b16 %v1817
    %v2271 = vunpack.c.l.b16 %v1818
    %v2272 = vunpack.c.h.b16 %v1818
    %v2273 = vunpack.c.l.b16 %v1819
    %v2274 = vunpack.c.l.b16 %v1820
    %v2275 = vunpack.c.h.b16 %v1820
    %v2276 = vunpack.c.l.b16 %v1821
    %v2277 = vunpack.c.h.b16 %v1821
    %v2278 = vunpack.c.l.b16 %v1822
    %v2279 = vunpack.c.l.b16 %v1823
    %v2280 = vunpack.c.h.b16 %v1823
    %v2281 = vunpack.c.l.b16 %v1824
    %v2282 = vunpack.c.h.b16 %v1824
    %v2283 = vunpack.c.l.b16 %v1825
    %v2284 = vunpack.c.l.b16 %v1826
    %v2285 = vunpack.c.h.b16 %v1826
    %v2286 = vunpack.c.l.b16 %v1827
    %v2287 = vunpack.c.h.b16 %v1827
    %v2288 = vunpack.c.l.b16 %v1828
    %v2289 = vunpack.c.l.b16 %v1829
    %v2290 = vunpack.c.h.b16 %v1829
    %v2291 = vunpack.c.l.b16 %v1830
    %v2292 = vunpack.c.h.b16 %v1830
    %v2293 = vunpack.c.l.b16 %v1831
    %v2294 = vunpack.c.l.b16 %v1832
    %v2295 = vunpack.c.h.b16 %v1832
    %v2296 = vunpack.c.l.b16 %v1833
    %v2297 = vunpack.c.h.b16 %v1833
    %v2298 = vunpack.c.l.b16 %v1834
    %v2299 = vunpack.c.l.b16 %v1835
    %v2300 = vunpack.c.h.b16 %v1835
    %v2301 = vunpack.c.l.b16 %v1836
    %v2302 = vunpack.c.h.b16 %v1836
    %v2303 = vunpack.c.l.b16 %v1837
    %v2304 = vunpack.c.l.b16 %v1838
    %v2305 = vunpack.c.h.b16 %v1838
    %v2306 = vunpack.c.l.b16 %v1839
    %v2307 = vunpack.c.h.b16 %v1839
    %v2308 = vunpack.c.l.b16 %v1840
    %v2309 = vunpack.c.l.b16 %v1841
    %v2310 = vunpack.c.h.b16 %v1841
    %v2311 = vunpack.c.l.b16 %v1842
    %v2312 = vunpack.c.h.b16 %v1842
    %v2313 = vunpack.c.l.b16 %v1843
    %v2314 = vunpack.c.l.b16 %v1844
    %v2315 = vunpack.c.h.b16 %v1844
    %v2316 = vunpack.c.l.b16 %v1845
    %v2317 = vunpack.c.h.b16 %v1845
    %v2318 = vunpack.c.l.b16 %v1846
    %v2319 = vunpack.c.l.b16 %v1847
    %v2320 = vunpack.c.h.b16 %v1847
    %v2321 = vunpack.c.l.b16 %v1848
    %v2322 = vunpack.c.h.b16 %v1848
    %v2323 = vunpack.c.l.b16 %v1849
    %v2324 = vunpack.c.l.b16 %v1850
    %v2325 = vunpack.c.h.b16 %v1850
    %v2326 = vunpack.c.l.b16 %v1851
    %v2327 = vunpack.c.h.b16 %v1851
    %v2328 = vunpack.c.l.b16 %v1852
    %v2329 = vunpack.c.l.b16 %v1853
    %v2330 = vunpack.c.h.b16 %v1853
    %v2331 = vunpack.c.l.b16 %v1854
    %v2332 = vunpack.c.h.b16 %v1854
    %v2333 = vunpack.c.l.b16 %v1855
    %v2334 = vunpack.c.l.b16 %v1856
    %v2335 = vunpack.c.h.b16 %v1856
    %v2336 = vunpack.c.l.b16 %v1857
    %v2337 = vunpack.c.h.b16 %v1857
    %v2338 = vunpack.c.l.b16 %v1858
    %v2339 = vunpack.c.l.b16 %v1859
    %v2340 = vunpack.c.h.b16 %v1859
    %v2341 = vunpack.c.l.b16 %v1860
    %v2342 = vunpack.c.h.b16 %v1860
    %v2343 = vunpack.c.l.b16 %v1861
    %v2344 = vunpack.c.l.b16 %v1862
    %v2345 = vunpack.c.h.b16 %v1862
    %v2346 = vunpack.c.l.b16 %v1863
    %v2347 = vunpack.c.h.b16 %v1863
    %v2348 = vunpack.c.l.b16 %v1864
    %v2349 = vunpack.c.l.b16 %v1865
    %v2350 = vunpack.c.h.b16 %v1865
    %v2351 = vunpack.c.l.b16 %v1866
    %v2352 = vunpack.c.h.b16 %v1866
    %v2353 = vunpack.c.l.b16 %v1867
    %v2354 = vunpack.c.l.b16 %v1868
    %v2355 = vunpack.c.h.b16 %v1868
    %v2356 = vunpack.c.l.b16 %v1869
    %v2357 = vunpack.c.h.b16 %v1869
    %v2358 = vunpack.c.l.b16 %v1870
    %v2359 = vunpack.c.l.b16 %v1871
    %v2360 = vunpack.c.h.b16 %v1871
    %v2361 = vunpack.c.l.b16 %v1872
    %v2362 = vunpack.c.h.b16 %v1872
    %v2363 = vunpack.c.l.b16 %v1873
    %v2364 = vunpack.c.l.b16 %v1874
    %v2365 = vunpack.c.h.b16 %v1874
    %v2366 = vunpack.c.l.b16 %v1875
    %v2367 = vunpack.c.h.b16 %v1875
    %v2368 = vunpack.c.l.b16 %v1876
    %v2369 = vunpack.c.l.b16 %v1877
    %v2370 = vunpack.c.h.b16 %v1877
    %v2371 = vunpack.c.l.b16 %v1878
    %v2372 = vunpack.c.h.b16 %v1878
    %v2373 = vunpack.c.l.b16 %v1879
    %v2374 = vunpack.c.l.b16 %v1880
    %v2375 = vunpack.c.h.b16 %v1880
    %v2376 = vunpack.c.l.b16 %v1881
    %v2377 = vunpack.c.h.b16 %v1881
    %v2378 = vunpack.c.l.b16 %v1882
    %v2379 = vunpack.c.l.b16 %v1883
    %v2380 = vunpack.c.h.b16 %v1883
    %v2381 = vunpack.c.l.b16 %v1884
    %v2382 = vunpack.c.h.b16 %v1884
    %v2383 = vunpack.c.l.b16 %v1885
    %v2384 = vunpack.c.l.b16 %v1886
    %v2385 = vunpack.c.h.b16 %v1886
    %v2386 = vunpack.c.l.b16 %v1887
    %v2387 = vunpack.c.h.b16 %v1887
    %v2388 = vunpack.c.l.b16 %v1888
    %v2389 = vunpack.c.l.b16 %v1889
    %v2390 = vunpack.c.h.b16 %v1889
    %v2391 = vunpack.c.l.b16 %v1890
    %v2392 = vunpack.c.h.b16 %v1890
    %v2393 = vunpack.c.l.b16 %v1891
    %v2394 = vunpack.c.l.b16 %v1892
    %v2395 = vunpack.c.h.b16 %v1892
    %v2396 = vunpack.c.l.b16 %v1893
    %v2397 = vunpack.c.h.b16 %v1893
    %v2398 = vunpack.c.l.b16 %v1894
    %v2399 = vunpack.c.l.b16 %v1895
    %v2400 = vunpack.c.h.b16 %v1895
    %v2401 = vunpack.c.l.b16 %v1896
    %v2402 = vunpack.c.h.b16 %v1896
    %v2403 = vunpack.c.l.b16 %v1897
    %v2404 = vunpack.c.l.b16 %v1898
    %v2405 = vunpack.c.h.b16 %v1898
    %v2406 = vunpack.c.l.b16 %v1899
    %v2407 = vunpack.c.h.b16 %v1899
    %v2408 = vunpack.c.l.b16 %v1900
    %v2409 = vunpack.c.l.b16 %v1901
    %v2410 = vunpack.c.h.b16 %v1901
    %v2411 = vunpack.c.l.b16 %v1902
    %v2412 = vunpack.c.h.b16 %v1902
    %v2413 = vunpack.c.l.b16 %v1903
    %v2414 = vunpack.c.l.b16 %v1904
    %v2415 = vunpack.c.h.b16 %v1904
    %v2416 = vunpack.c.l.b16 %v1905
    %v2417 = vunpack.c.h.b16 %v1905
    %v2418 = vunpack.c.l.b16 %v1906
    %v2419 = vunpack.c.l.b16 %v1907
    %v2420 = vunpack.c.h.b16 %v1907
    %v2421 = vunpack.c.l.b16 %v1908
    %v2422 = vunpack.c.h.b16 %v1908
    %v2423 = vunpack.c.l.b16 %v1909
    %v2424 = vunpack.c.l.b16 %v1910
    %v2425 = vunpack.c.h.b16 %v1910
    %v2426 = vunpack.c.l.b16 %v1911
    %v2427 = vunpack.c.h.b16 %v1911
    %v2428 = vunpack.c.l.b16 %v1912
    %v2429 = vunpack.c.l.b16 %v1913
    %v2430 = vunpack.c.h.b16 %v1913
    %v2431 = vunpack.c.l.b16 %v1914
    %v2432 = vunpack.c.h.b16 %v1914
    %v2433 = vunpack.c.l.b16 %v1915
    %v2434 = vunpack.c.l.b16 %v1916
    %v2435 = vunpack.c.h.b16 %v1916
    %v2436 = vunpack.c.l.b16 %v1917
    %v2437 = vunpack.c.h.b16 %v1917
    %v2438 = vunpack.c.l.b16 %v1918
    %v2439 = vunpack.c.l.b16 %v1919
    %v2440 = vunpack.c.h.b16 %v1919
    %v2441 = vunpack.c.l.b16 %v1920
    %v2442 = vunpack.c.h.b16 %v1920
    %v2443 = vunpack.c.l.b16 %v1921
    %v2444 = vunpack.c.l.b16 %v1922
    %v2445 = vunpack.c.h.b16 %v1922
    %v2446 = vunpack.c.l.b16 %v1923
    %v2447 = vunpack.c.h.b16 %v1923
    %v2448 = vunpack.c.l.b16 %v1924
    %v2449 = vpack.c.b16 %v2134, %v2129
    %v2450 = vpack.c.b16 %v2135, %v2130
    %v2451 = vpack.c.b16 %v2136, %v2131
    %v2452 = vpack.c.b16 %v2137, %v2132
    %v2453 = vpack.c.b16 %v2138, %v2133
    %v2454 = vpack.c.b16 %v2144, %v2139
    %v2455 = vpack.c.b16 %v2145, %v2140
    %v2456 = vpack.c.b16 %v2146, %v2141
    %v2457 = vpack.c.b16 %v2147, %v2142
    %v2458 = vpack.c.b16 %v2148, %v2143
    %v2459 = vpack.c.b16 %v2154, %v2149
    %v2460 = vpack.c.b16 %v2155, %v2150
    %v2461 = vpack.c.b16 %v2156, %v2151
    %v2462 = vpack.c.b16 %v2157, %v2152
    %v2463 = vpack.c.b16 %v2158, %v2153
    %v2464 = vpack.c.b16 %v2164, %v2159
    %v2465 = vpack.c.b16 %v2165, %v2160
    %v2466 = vpack.c.b16 %v2166, %v2161
    %v2467 = vpack.c.b16 %v2167, %v2162
    %v2468 = vpack.c.b16 %v2168, %v2163
    %v2469 = vpack.c.b16 %v2174, %v2169
    %v2470 = vpack.c.b16 %v2175, %v2170
    %v2471 = vpack.c.b16 %v2176, %v2171
    %v2472 = vpack.c.b16 %v2177, %v2172
    %v2473 = vpack.c.b16 %v2178, %v2173
    %v2474 = vpack.c.b16 %v2184, %v2179
    %v2475 = vpack.c.b16 %v2185, %v2180
    %v2476 = vpack.c.b16 %v2186, %v2181
    %v2477 = vpack.c.b16 %v2187, %v2182
    %v2478 = vpack.c.b16 %v2188, %v2183
    %v2479 = vpack.c.b16 %v2194, %v2189
    %v2480 = vpack.c.b16 %v2195, %v2190
    %v2481 = vpack.c.b16 %v2196, %v2191
    %v2482 = vpack.c.b16 %v2197, %v2192
    %v2483 = vpack.c.b16 %v2198, %v2193
    %v2484 = vpack.c.b16 %v2204, %v2199
    %v2485 = vpack.c.b16 %v2205, %v2200
    %v2486 = vpack.c.b16 %v2206, %v2201
    %v2487 = vpack.c.b16 %v2207, %v2202
    %v2488 = vpack.c.b16 %v2208, %v2203
    %v2489 = vpack.c.b16 %v2214, %v2209
    %v2490 = vpack.c.b16 %v2215, %v2210
    %v2491 = vpack.c.b16 %v2216, %v2211
    %v2492 = vpack.c.b16 %v2217, %v2212
    %v2493 = vpack.c.b16 %v2218, %v2213
    %v2494 = vpack.c.b16 %v2224, %v2219
    %v2495 = vpack.c.b16 %v2225, %v2220
    %v2496 = vpack.c.b16 %v2226, %v2221
    %v2497 = vpack.c.b16 %v2227, %v2222
    %v2498 = vpack.c.b16 %v2228, %v2223
    %v2499 = vpack.c.b16 %v2234, %v2229
    %v2500 = vpack.c.b16 %v2235, %v2230
    %v2501 = vpack.c.b16 %v2236, %v2231
    %v2502 = vpack.c.b16 %v2237, %v2232
    %v2503 = vpack.c.b16 %v2238, %v2233
    %v2504 = vpack.c.b16 %v2244, %v2239
    %v2505 = vpack.c.b16 %v2245, %v2240
    %v2506 = vpack.c.b16 %v2246, %v2241
    %v2507 = vpack.c.b16 %v2247, %v2242
    %v2508 = vpack.c.b16 %v2248, %v2243
    %v2509 = vpack.c.b16 %v2254, %v2249
    %v2510 = vpack.c.b16 %v2255, %v2250
    %v2511 = vpack.c.b16 %v2256, %v2251
    %v2512 = vpack.c.b16 %v2257, %v2252
    %v2513 = vpack.c.b16 %v2258, %v2253
    %v2514 = vpack.c.b16 %v2264, %v2259
    %v2515 = vpack.c.b16 %v2265, %v2260
    %v2516 = vpack.c.b16 %v2266, %v2261
    %v2517 = vpack.c.b16 %v2267, %v2262
    %v2518 = vpack.c.b16 %v2268, %v2263
    %v2519 = vpack.c.b16 %v2274, %v2269
    %v2520 = vpack.c.b16 %v2275, %v2270
    %v2521 = vpack.c.b16 %v2276, %v2271
    %v2522 = vpack.c.b16 %v2277, %v2272
    %v2523 = vpack.c.b16 %v2278, %v2273
    %v2524 = vpack.c.b16 %v2284, %v2279
    %v2525 = vpack.c.b16 %v2285, %v2280
    %v2526 = vpack.c.b16 %v2286, %v2281
    %v2527 = vpack.c.b16 %v2287, %v2282
    %v2528 = vpack.c.b16 %v2288, %v2283
    %v2529 = vpack.c.b16 %v2294, %v2289
    %v2530 = vpack.c.b16 %v2295, %v2290
    %v2531 = vpack.c.b16 %v2296, %v2291
    %v2532 = vpack.c.b16 %v2297, %v2292
    %v2533 = vpack.c.b16 %v2298, %v2293
    %v2534 = vpack.c.b16 %v2304, %v2299
    %v2535 = vpack.c.b16 %v2305, %v2300
    %v2536 = vpack.c.b16 %v2306, %v2301
    %v2537 = vpack.c.b16 %v2307, %v2302
    %v2538 = vpack.c.b16 %v2308, %v2303
    %v2539 = vpack.c.b16 %v2314, %v2309
    %v2540 = vpack.c.b16 %v2315, %v2310
    %v2541 = vpack.c.b16 %v2316, %v2311
    %v2542 = vpack.c.b16 %v2317, %v2312
    %v2543 = vpack.c.b16 %v2318, %v2313
    %v2544 = vpack.c.b16 %v2324, %v2319
    %v2545 = vpack.c.b16 %v2325, %v2320
    %v2546 = vpack.c.b16 %v2326, %v2321
    %v2547 = vpack.c.b16 %v2327, %v2322
    %v2548 = vpack.c.b16 %v2328, %v2323
    %v2549 = vpack.c.b16 %v2334, %v2329
    %v2550 = vpack.c.b16 %v2335, %v2330
    %v2551 = vpack.c.b16 %v2336, %v2331
    %v2552 = vpack.c.b16 %v2337, %v2332
    %v2553 = vpack.c.b16 %v2338, %v2333
    %v2554 = vpack.c.b16 %v2344, %v2339
    %v2555 = vpack.c.b16 %v2345, %v2340
    %v2556 = vpack.c.b16 %v2346, %v2341
    %v2557 = vpack.c.b16 %v2347, %v2342
    %v2558 = vpack.c.b16 %v2348, %v2343
    %v2559 = vpack.c.b16 %v2354, %v2349
    %v2560 = vpack.c.b16 %v2355, %v2350
    %v2561 = vpack.c.b16 %v2356, %v2351
    %v2562 = vpack.c.b16 %v2357, %v2352
    %v2563 = vpack.c.b16 %v2358, %v2353
    %v2564 = vpack.c.b16 %v2364, %v2359
    %v2565 = vpack.c.b16 %v2365, %v2360
    %v2566 = vpack.c.b16 %v2366, %v2361
    %v2567 = vpack.c.b16 %v2367, %v2362
    %v2568 = vpack.c.b16 %v2368, %v2363
    %v2569 = vpack.c.b16 %v2374, %v2369
    %v2570 = vpack.c.b16 %v2375, %v2370
    %v2571 = vpack.c.b16 %v2376, %v2371
    %v2572 = vpack.c.b16 %v2377, %v2372
    %v2573 = vpack.c.b16 %v2378, %v2373
    %v2574 = vpack.c.b16 %v2384, %v2379
    %v2575 = vpack.c.b16 %v2385, %v2380
    %v2576 = vpack.c.b16 %v2386, %v2381
    %v2577 = vpack.c.b16 %v2387, %v2382
    %v2578 = vpack.c.b16 %v2388, %v2383
    %v2579 = vpack.c.b16 %v2394, %v2389
    %v2580 = vpack.c.b16 %v2395, %v2390
    %v2581 = vpack.c.b16 %v2396, %v2391
    %v2582 = vpack.c.b16 %v2397, %v2392
    %v2583 = vpack.c.b16 %v2398, %v2393
    %v2584 = vpack.c.b16 %v2404, %v2399
    %v2585 = vpack.c.b16 %v2405, %v2400
    %v2586 = vpack.c.b16 %v2406, %v2401
    %v2587 = vpack.c.b16 %v2407, %v2402
    %v2588 = vpack.c.b16 %v2408, %v2403
    %v2589 = vpack.c.b16 %v2414, %v2409
    %v2590 = vpack.c.b16 %v2415, %v2410
    %v2591 = vpack.c.b16 %v2416, %v2411
    %v2592 = vpack.c.b16 %v2417, %v2412
    %v2593 = vpack.c.b16 %v2418, %v2413
    %v2594 = vpack.c.b16 %v2424, %v2419
    %v2595 = vpack.c.b16 %v2425, %v2420
    %v2596 = vpack.c.b16 %v2426, %v2421
    %v2597 = vpack.c.b16 %v2427, %v2422
    %v2598 = vpack.c.b16 %v2428, %v2423
    %v2599 = vpack.c.b16 %v2434, %v2429
    %v2600 = vpack.c.b16 %v2435, %v2430
    %v2601 = vpack.c.b16 %v2436, %v2431
    %v2602 = vpack.c.b16 %v2437, %v2432
    %v2603 = vpack.c.b16 %v2438, %v2433
    %v2604 = vpack.c.b16 %v2444, %v2439
    %v2605 = vpack.c.b16 %v2445, %v2440
    %v2606 = vpack.c.b16 %v2446, %v2441
    %v2607 = vpack.c.b16 %v2447, %v2442
    %v2608 = vpack.c.b16 %v2448, %v2443
    %2769 = vmatpush.bf16.msra.mxu0 %v2484
    %2770 = vmatpush.bf16.msra.mxu0 %v2479
    %2771 = vmatpush.bf16.msra.mxu0 %v2474
    %2772 = vmatpush.bf16.msra.mxu0 %v2469
    %2773 = vmatpush.bf16.msra.mxu0 %v2464
    %2774 = vmatpush.bf16.msra.mxu0 %v2459
    %2775 = vmatpush.bf16.msra.mxu0 %v2454
    %2776 = vmatpush.bf16.msra.mxu0 %v2449
    %2777 = vmatmul.bf16.gmra.mxu0 %v1729
    %v2778 = vpop.f32.mrf.mxu0
    %v2779 = vadd.f32 %v1927, %v2778
    %v2780 = vpop.f32.mrf.mxu0
    %v2781 = vadd.f32 %v1927, %v2780
    %2782 = vdwg.mxu0
    %2783 = vmatpush.bf16.msra.mxu0 %v2524
    %2784 = vmatpush.bf16.msra.mxu0 %v2519
    %2785 = vmatpush.bf16.msra.mxu0 %v2514
    %2786 = vmatpush.bf16.msra.mxu0 %v2509
    %2787 = vmatpush.bf16.msra.mxu0 %v2504
    %2788 = vmatpush.bf16.msra.mxu0 %v2499
    %2789 = vmatpush.bf16.msra.mxu0 %v2494
    %2790 = vmatpush.bf16.msra.mxu0 %v2489
    %2791 = vmatmul.bf16.gmra.mxu0 %v1730
    %v2792 = vpop.f32.mrf.mxu0
    %v2793 = vadd.f32 %v2779, %v2792
    %v2794 = vpop.f32.mrf.mxu0
    %v2795 = vadd.f32 %v2781, %v2794
    %2796 = vdwg.mxu0
    %2797 = vmatpush.bf16.msra.mxu0 %v2564
    %2798 = vmatpush.bf16.msra.mxu0 %v2559
    %2799 = vmatpush.bf16.msra.mxu0 %v2554
    %2800 = vmatpush.bf16.msra.mxu0 %v2549
    %2801 = vmatpush.bf16.msra.mxu0 %v2544
    %2802 = vmatpush.bf16.msra.mxu0 %v2539
    %2803 = vmatpush.bf16.msra.mxu0 %v2534
    %2804 = vmatpush.bf16.msra.mxu0 %v2529
    %2805 = vmatmul.bf16.gmra.mxu0 %v1731
    %v2806 = vpop.f32.mrf.mxu0
    %v2807 = vadd.f32 %v2793, %v2806
    %v2808 = vpop.f32.mrf.mxu0
    %v2809 = vadd.f32 %v2795, %v2808
    %2810 = vdwg.mxu0
    %2811 = vmatpush.bf16.msra.mxu0 %v2604
    %2812 = vmatpush.bf16.msra.mxu0 %v2599
    %2813 = vmatpush.bf16.msra.mxu0 %v2594
    %2814 = vmatpush.bf16.msra.mxu0 %v2589
    %2815 = vmatpush.bf16.msra.mxu0 %v2584
    %2816 = vmatpush.bf16.msra.mxu0 %v2579
    %2817 = vmatpush.bf16.msra.mxu0 %v2574
    %2818 = vmatpush.bf16.msra.mxu0 %v2569
    %2819 = vmatmul.bf16.gmra.mxu0 %v1732
    %v2820 = vpop.f32.mrf.mxu0
    %v2821 = vadd.f32 %v2807, %v2820
    %v2822 = vpop.f32.mrf.mxu0
    %v2823 = vadd.f32 %v2809, %v2822
    %2824 = vdwg.mxu0
    %2825 = vmatpush.bf16.msra.mxu0 %v2485
    %2826 = vmatpush.bf16.msra.mxu0 %v2480
    %2827 = vmatpush.bf16.msra.mxu0 %v2475
    %2828 = vmatpush.bf16.msra.mxu0 %v2470
    %2829 = vmatpush.bf16.msra.mxu0 %v2465
    %2830 = vmatpush.bf16.msra.mxu0 %v2460
    %2831 = vmatpush.bf16.msra.mxu0 %v2455
    %2832 = vmatpush.bf16.msra.mxu0 %v2450
    %2833 = vmatmul.bf16.gmra.mxu0 %v1729
    %v2834 = vpop.f32.mrf.mxu0
    %v2835 = vadd.f32 %v1928, %v2834
    %v2836 = vpop.f32.mrf.mxu0
    %v2837 = vadd.f32 %v1928, %v2836
    %2838 = vdwg.mxu0
    %2839 = vmatpush.bf16.msra.mxu0 %v2525
    %2840 = vmatpush.bf16.msra.mxu0 %v2520
    %2841 = vmatpush.bf16.msra.mxu0 %v2515
    %2842 = vmatpush.bf16.msra.mxu0 %v2510
    %2843 = vmatpush.bf16.msra.mxu0 %v2505
    %2844 = vmatpush.bf16.msra.mxu0 %v2500
    %2845 = vmatpush.bf16.msra.mxu0 %v2495
    %2846 = vmatpush.bf16.msra.mxu0 %v2490
    %2847 = vmatmul.bf16.gmra.mxu0 %v1730
    %v2848 = vpop.f32.mrf.mxu0
    %v2849 = vadd.f32 %v2835, %v2848
    %v2850 = vpop.f32.mrf.mxu0
    %v2851 = vadd.f32 %v2837, %v2850
    %2852 = vdwg.mxu0
    %2853 = vmatpush.bf16.msra.mxu0 %v2565
    %2854 = vmatpush.bf16.msra.mxu0 %v2560
    %2855 = vmatpush.bf16.msra.mxu0 %v2555
    %2856 = vmatpush.bf16.msra.mxu0 %v2550
    %2857 = vmatpush.bf16.msra.mxu0 %v2545
    %2858 = vmatpush.bf16.msra.mxu0 %v2540
    %2859 = vmatpush.bf16.msra.mxu0 %v2535
    %2860 = vmatpush.bf16.msra.mxu0 %v2530
    %2861 = vmatmul.bf16.gmra.mxu0 %v1731
    %v2862 = vpop.f32.mrf.mxu0
    %v2863 = vadd.f32 %v2849, %v2862
    %v2864 = vpop.f32.mrf.mxu0
    %v2865 = vadd.f32 %v2851, %v2864
    %2866 = vdwg.mxu0
    %2867 = vmatpush.bf16.msra.mxu0 %v2605
    %2868 = vmatpush.bf16.msra.mxu0 %v2600
    %2869 = vmatpush.bf16.msra.mxu0 %v2595
    %2870 = vmatpush.bf16.msra.mxu0 %v2590
    %2871 = vmatpush.bf16.msra.mxu0 %v2585
    %2872 = vmatpush.bf16.msra.mxu0 %v2580
    %2873 = vmatpush.bf16.msra.mxu0 %v2575
    %2874 = vmatpush.bf16.msra.mxu0 %v2570
    %2875 = vmatmul.bf16.gmra.mxu0 %v1732
    %v2876 = vpop.f32.mrf.mxu0
    %v2877 = vadd.f32 %v2863, %v2876
    %v2878 = vpop.f32.mrf.mxu0
    %v2879 = vadd.f32 %v2865, %v2878
    %2880 = vdwg.mxu0
    %2881 = vmatpush.bf16.msra.mxu0 %v2486
    %2882 = vmatpush.bf16.msra.mxu0 %v2481
    %2883 = vmatpush.bf16.msra.mxu0 %v2476
    %2884 = vmatpush.bf16.msra.mxu0 %v2471
    %2885 = vmatpush.bf16.msra.mxu0 %v2466
    %2886 = vmatpush.bf16.msra.mxu0 %v2461
    %2887 = vmatpush.bf16.msra.mxu0 %v2456
    %2888 = vmatpush.bf16.msra.mxu0 %v2451
    %2889 = vmatmul.bf16.gmra.mxu0 %v1729
    %v2890 = vpop.f32.mrf.mxu0
    %v2891 = vadd.f32 %v1929, %v2890
    %v2892 = vpop.f32.mrf.mxu0
    %v2893 = vadd.f32 %v1929, %v2892
    %2894 = vdwg.mxu0
    %2895 = vmatpush.bf16.msra.mxu0 %v2526
    %2896 = vmatpush.bf16.msra.mxu0 %v2521
    %2897 = vmatpush.bf16.msra.mxu0 %v2516
    %2898 = vmatpush.bf16.msra.mxu0 %v2511
    %2899 = vmatpush.bf16.msra.mxu0 %v2506
    %2900 = vmatpush.bf16.msra.mxu0 %v2501
    %2901 = vmatpush.bf16.msra.mxu0 %v2496
    %2902 = vmatpush.bf16.msra.mxu0 %v2491
    %2903 = vmatmul.bf16.gmra.mxu0 %v1730
    %v2904 = vpop.f32.mrf.mxu0
    %v2905 = vadd.f32 %v2891, %v2904
    %v2906 = vpop.f32.mrf.mxu0
    %v2907 = vadd.f32 %v2893, %v2906
    %2908 = vdwg.mxu0
    %2909 = vmatpush.bf16.msra.mxu0 %v2566
    %2910 = vmatpush.bf16.msra.mxu0 %v2561
    %2911 = vmatpush.bf16.msra.mxu0 %v2556
    %2912 = vmatpush.bf16.msra.mxu0 %v2551
    %2913 = vmatpush.bf16.msra.mxu0 %v2546
    %2914 = vmatpush.bf16.msra.mxu0 %v2541
    %2915 = vmatpush.bf16.msra.mxu0 %v2536
    %2916 = vmatpush.bf16.msra.mxu0 %v2531
    %2917 = vmatmul.bf16.gmra.mxu0 %v1731
    %v2918 = vpop.f32.mrf.mxu0
    %v2919 = vadd.f32 %v2905, %v2918
    %v2920 = vpop.f32.mrf.mxu0
    %v2921 = vadd.f32 %v2907, %v2920
    %2922 = vdwg.mxu0
    %2923 = vmatpush.bf16.msra.mxu0 %v2606
    %2924 = vmatpush.bf16.msra.mxu0 %v2601
    %2925 = vmatpush.bf16.msra.mxu0 %v2596
    %2926 = vmatpush.bf16.msra.mxu0 %v2591
    %2927 = vmatpush.bf16.msra.mxu0 %v2586
    %2928 = vmatpush.bf16.msra.mxu0 %v2581
    %2929 = vmatpush.bf16.msra.mxu0 %v2576
    %2930 = vmatpush.bf16.msra.mxu0 %v2571
    %2931 = vmatmul.bf16.gmra.mxu0 %v1732
    %v2932 = vpop.f32.mrf.mxu0
    %v2933 = vadd.f32 %v2919, %v2932
    %v2934 = vpop.f32.mrf.mxu0
    %v2935 = vadd.f32 %v2921, %v2934
    %2936 = vdwg.mxu0
    %2937 = vmatpush.bf16.msra.mxu0 %v2487
    %2938 = vmatpush.bf16.msra.mxu0 %v2482
    %2939 = vmatpush.bf16.msra.mxu0 %v2477
    %2940 = vmatpush.bf16.msra.mxu0 %v2472
    %2941 = vmatpush.bf16.msra.mxu0 %v2467
    %2942 = vmatpush.bf16.msra.mxu0 %v2462
    %2943 = vmatpush.bf16.msra.mxu0 %v2457
    %2944 = vmatpush.bf16.msra.mxu0 %v2452
    %2945 = vmatmul.bf16.gmra.mxu0 %v1729
    %v2946 = vpop.f32.mrf.mxu0
    %v2947 = vadd.f32 %v1930, %v2946
    %v2948 = vpop.f32.mrf.mxu0
    %v2949 = vadd.f32 %v1930, %v2948
    %2950 = vdwg.mxu0
    %2951 = vmatpush.bf16.msra.mxu0 %v2527
    %2952 = vmatpush.bf16.msra.mxu0 %v2522
    %2953 = vmatpush.bf16.msra.mxu0 %v2517
    %2954 = vmatpush.bf16.msra.mxu0 %v2512
    %2955 = vmatpush.bf16.msra.mxu0 %v2507
    %2956 = vmatpush.bf16.msra.mxu0 %v2502
    %2957 = vmatpush.bf16.msra.mxu0 %v2497
    %2958 = vmatpush.bf16.msra.mxu0 %v2492
    %2959 = vmatmul.bf16.gmra.mxu0 %v1730
    %v2960 = vpop.f32.mrf.mxu0
    %v2961 = vadd.f32 %v2947, %v2960
    %v2962 = vpop.f32.mrf.mxu0
    %v2963 = vadd.f32 %v2949, %v2962
    %2964 = vdwg.mxu0
    %2965 = vmatpush.bf16.msra.mxu0 %v2567
    %2966 = vmatpush.bf16.msra.mxu0 %v2562
    %2967 = vmatpush.bf16.msra.mxu0 %v2557
    %2968 = vmatpush.bf16.msra.mxu0 %v2552
    %2969 = vmatpush.bf16.msra.mxu0 %v2547
    %2970 = vmatpush.bf16.msra.mxu0 %v2542
    %2971 = vmatpush.bf16.msra.mxu0 %v2537
    %2972 = vmatpush.bf16.msra.mxu0 %v2532
    %2973 = vmatmul.bf16.gmra.mxu0 %v1731
    %v2974 = vpop.f32.mrf.mxu0
    %v2975 = vadd.f32 %v2961, %v2974
    %v2976 = vpop.f32.mrf.mxu0
    %v2977 = vadd.f32 %v2963, %v2976
    %2978 = vdwg.mxu0
    %2979 = vmatpush.bf16.msra.mxu0 %v2607
    %2980 = vmatpush.bf16.msra.mxu0 %v2602
    %2981 = vmatpush.bf16.msra.mxu0 %v2597
    %2982 = vmatpush.bf16.msra.mxu0 %v2592
    %2983 = vmatpush.bf16.msra.mxu0 %v2587
    %2984 = vmatpush.bf16.msra.mxu0 %v2582
    %2985 = vmatpush.bf16.msra.mxu0 %v2577
    %2986 = vmatpush.bf16.msra.mxu0 %v2572
    %2987 = vmatmul.bf16.gmra.mxu0 %v1732
    %v2988 = vpop.f32.mrf.mxu0
    %v2989 = vadd.f32 %v2975, %v2988
    %v2990 = vpop.f32.mrf.mxu0
    %v2991 = vadd.f32 %v2977, %v2990
    %2992 = vdwg.mxu0
    %2993 = vmatpush.bf16.msra.mxu0 %v2488
    %2994 = vmatpush.bf16.msra.mxu0 %v2483
    %2995 = vmatpush.bf16.msra.mxu0 %v2478
    %2996 = vmatpush.bf16.msra.mxu0 %v2473
    %2997 = vmatpush.bf16.msra.mxu0 %v2468
    %2998 = vmatpush.bf16.msra.mxu0 %v2463
    %2999 = vmatpush.bf16.msra.mxu0 %v2458
    %3000 = vmatpush.bf16.msra.mxu0 %v2453
    %3001 = vmatmul.bf16.gmra.mxu0 %v1729
    %v3002 = vpop.f32.mrf.mxu0
    %v3003 = vadd.f32 %v1931, %v3002
    %v3004 = vpop.f32.mrf.mxu0
    %v3005 = vadd.f32 %v1931, %v3004
    %3006 = vdwg.mxu0
    %3007 = vmatpush.bf16.msra.mxu0 %v2528
    %3008 = vmatpush.bf16.msra.mxu0 %v2523
    %3009 = vmatpush.bf16.msra.mxu0 %v2518
    %3010 = vmatpush.bf16.msra.mxu0 %v2513
    %3011 = vmatpush.bf16.msra.mxu0 %v2508
    %3012 = vmatpush.bf16.msra.mxu0 %v2503
    %3013 = vmatpush.bf16.msra.mxu0 %v2498
    %3014 = vmatpush.bf16.msra.mxu0 %v2493
    %3015 = vmatmul.bf16.gmra.mxu0 %v1730
    %v3016 = vpop.f32.mrf.mxu0
    %v3017 = vadd.f32 %v3003, %v3016
    %v3018 = vpop.f32.mrf.mxu0
    %v3019 = vadd.f32 %v3005, %v3018
    %3020 = vdwg.mxu0
    %3021 = vmatpush.bf16.msra.mxu0 %v2568
    %3022 = vmatpush.bf16.msra.mxu0 %v2563
    %3023 = vmatpush.bf16.msra.mxu0 %v2558
    %3024 = vmatpush.bf16.msra.mxu0 %v2553
    %3025 = vmatpush.bf16.msra.mxu0 %v2548
    %3026 = vmatpush.bf16.msra.mxu0 %v2543
    %3027 = vmatpush.bf16.msra.mxu0 %v2538
    %3028 = vmatpush.bf16.msra.mxu0 %v2533
    %3029 = vmatmul.bf16.gmra.mxu0 %v1731
    %v3030 = vpop.f32.mrf.mxu0
    %v3031 = vadd.f32 %v3017, %v3030
    %v3032 = vpop.f32.mrf.mxu0
    %v3033 = vadd.f32 %v3019, %v3032
    %3034 = vdwg.mxu0
    %3035 = vmatpush.bf16.msra.mxu0 %v2608
    %3036 = vmatpush.bf16.msra.mxu0 %v2603
    %3037 = vmatpush.bf16.msra.mxu0 %v2598
    %3038 = vmatpush.bf16.msra.mxu0 %v2593
    %3039 = vmatpush.bf16.msra.mxu0 %v2588
    %3040 = vmatpush.bf16.msra.mxu0 %v2583
    %3041 = vmatpush.bf16.msra.mxu0 %v2578
    %3042 = vmatpush.bf16.msra.mxu0 %v2573
    %3043 = vmatmul.bf16.gmra.mxu0 %v1732
    %v3044 = vpop.f32.mrf.mxu0
    %v3045 = vadd.f32 %v3031, %v3044
    %v3046 = vpop.f32.mrf.mxu0
    %v3047 = vadd.f32 %v3033, %v3046
    %3048 = vdwg.mxu0
    %3049 = vst [vmem:[#allocation11] sm:$0xff] %v2821
    %3050 = vst [vmem:[#allocation11 + $0x8] sm:$0xff] %v2877
    %3051 = vst [vmem:[#allocation11 + $0x10] sm:$0xff] %v2933
    %3052 = vst [vmem:[#allocation11 + $0x18] sm:$0xff] %v2989
    %3053 = vst [vmem:[#allocation11 + $0x20] sm:$0xff] %v3045
    %3054 = vst [vmem:[#allocation11 + $0x28] sm:$0xff] %v2823
    %3055 = vst [vmem:[#allocation11 + $0x30] sm:$0xff] %v2879
    %3056 = vst [vmem:[#allocation11 + $0x38] sm:$0xff] %v2935
    %3057 = vst [vmem:[#allocation11 + $0x40] sm:$0xff] %v2991
    %3058 = vst [vmem:[#allocation11 + $0x48] sm:$0xff] %v3047
    // Predicated region
    $region42: #{tpu_custom_call.1} parent=1 // pred_check
      _
    $region43: #{tpu_custom_call.1} parent=1 // pred_check_branch
      %3060 = sbr.rel (0) target = $region45
    $region44: #{tpu_custom_call.1} parent=1 // pred_region
      %3062 = vsyncadd [#allocation4], 0
      %s3063 = sshll.u32 [#allocation11], 4
      %s3064 = int_to_ptr.vmem [resolvable:$true] %s3063
      %s3065 = sshll.u32 %s5, 4
      %s3066 = int_to_ptr.hbm [resolvable:$true] %s3065
      %3071 = dma.vmem_to_hbm [thread:$0]  %s3064, 1280, %s3066, [#allocation4], 640, 640, 40
    $region45: #{tpu_custom_call.1} parent=1 // pred_fallthru
      _
    // Predicated region
    $region46: #{tpu_custom_call.1} parent=1 // pred_check
      _
    $region47: #{tpu_custom_call.1} parent=1 // pred_check_branch
      %3073 = sbr.rel (0) target = $region49
    $region48: #{tpu_custom_call.1} parent=1 // pred_region
      %3075 = dma.done [#allocation4], 1280
    $region49: #{tpu_custom_call.1} parent=1 // pred_fallthru
      _
    %3076 = vsyncpa [#allocation3], 1
    %3077 = vsyncpa [#allocation6], 1
    %3078 = vsyncpa [#allocation9], 1
    %3079 = vsyncpa [#allocation4], 1

</llo_original>
